<compile_context>
chip_gen: v5e
topology: v5e:2x2
jax: 0.10.0
libtpu: 0.0.40
codegen_flags: <defaults>
</compile_context>

<pallas_src>
import functools

import jax
import jax.numpy as jnp
from jax.experimental import pallas as pl
from jax.experimental.pallas import tpu as pltpu


def _mlp_kernel(x_ref,
                w1_ref, b1_ref,
                w2_ref, b2_ref,
                w3_ref, b3_ref,
                w4_ref, b4_ref,
                o_ref):
    """Fused 4-layer MLP: (Lin+ReLU)x3, Lin+Sigmoid. One batch tile per grid step.

    MXU operands are bf16; accumulation, bias-add and activations are f32.
    Output is stored as bf16 (o_ref dtype).
    """
    x = x_ref[...]  # already bf16

    # encoder: Linear(input_size, 128) + ReLU
    h = jnp.dot(x, w1_ref[...], preferred_element_type=jnp.float32) + b1_ref[...]
    h = jnp.maximum(h, 0.0)

    # encoder: Linear(128, 256) + ReLU
    h = jnp.dot(h.astype(jnp.bfloat16), w2_ref[...],
                preferred_element_type=jnp.float32) + b2_ref[...]
    h = jnp.maximum(h, 0.0)

    # decoder: Linear(256, 128) + ReLU
    h = jnp.dot(h.astype(jnp.bfloat16), w3_ref[...],
                preferred_element_type=jnp.float32) + b3_ref[...]
    h = jnp.maximum(h, 0.0)

    # decoder: Linear(128, input_size*input_size) + Sigmoid
    h = jnp.dot(h.astype(jnp.bfloat16), w4_ref[...],
                preferred_element_type=jnp.float32) + b4_ref[...]
    # sigmoid(h) == 0.5 * (tanh(0.5*h) + 1): a single EUP transcendental per
    # element (vs exp + reciprocal), computed in f32, stored as bf16.
    o_ref[...] = (0.5 * (jnp.tanh(0.5 * h) + 1.0)).astype(o_ref.dtype)


@functools.partial(jax.jit,
                   static_argnames=("input_size", "output_channels",
                                    "batch_tile", "out_dtype"))
def map_generator_forward(x, params, *, input_size=64, output_channels=1,
                          batch_tile=512, out_dtype=jnp.float32):
    """Pallas implementation of MapGenerator.forward.

    x: (B, input_size) float32 (or bf16)
    params: weights preferably pre-cast to bf16 (see prepare_params); biases f32.
    returns: (B, output_channels, input_size, input_size) in out_dtype.
    """
    w1, b1, w2, b2, w3, b3, w4, b4 = params
    B = x.shape[0]
    out_dim = input_size * input_size * output_channels

    # Effective batch tile: never larger than the (8-row padded) batch.
    padded_b8 = ((B + 7) // 8) * 8
    tile = min(batch_tile, padded_b8)
    # Keep the grid at >= 2 steps when the batch allows, so the "parallel"
    # batch axis can shard across v7x's two TensorCores (no-op on v5e/v6e).
    if tile >= padded_b8 and padded_b8 >= 16:
        tile = ((padded_b8 // 2 + 7) // 8) * 8

    # Pad batch to a multiple of the tile (padded rows are computed and dropped).
    padded_b = pl.cdiv(B, tile) * tile
    x = x.astype(jnp.bfloat16)
    if padded_b != B:
        x = jnp.pad(x, ((0, padded_b - B), (0, 0)))

    # bf16 weights for the MXU (no-op casts if prepare_params already did it);
    # biases stay f32 and are added to the f32 accumulators.
    w1b, w2b, w3b, w4b = (w.astype(jnp.bfloat16) for w in (w1, w2, w3, w4))

    grid = (padded_b // tile,)

    # Weights/biases are small enough to live fully in VMEM for every grid step
    # (constant index_map => fetched once, never re-DMA'd across steps).
    full = lambda shape: pl.BlockSpec(shape, lambda i: (0,) * len(shape))

    layer_macs = input_size * 128 + 128 * 256 + 256 * 128 + 128 * out_dim
    cost = pl.CostEstimate(
        flops=2 * padded_b * layer_macs,
        transcendentals=padded_b * out_dim,                      # one tanh / elem
        bytes_accessed=(2 * layer_macs                           # bf16 weights
                        + 4 * (128 + 256 + 128 + out_dim)        # f32 biases
                        + 2 * padded_b * (input_size + out_dim)  # bf16 x + out
                        ),
    )

    out = pl.pallas_call(
        _mlp_kernel,
        out_shape=jax.ShapeDtypeStruct((padded_b, out_dim), jnp.bfloat16),
        grid_spec=pltpu.PrefetchScalarGridSpec(
            num_scalar_prefetch=0,
            grid=grid,
            in_specs=[
                pl.BlockSpec((tile, input_size), lambda i: (i, 0)),  # x tile (bf16)
                full(w1b.shape), full(b1.shape),
                full(w2b.shape), full(b2.shape),
                full(w3b.shape), full(b3.shape),
                full(w4b.shape), full(b4.shape),
            ],
            out_specs=pl.BlockSpec((tile, out_dim), lambda i: (i, 0)),
        ),
        compiler_params=pltpu.CompilerParams(
            dimension_semantics=("parallel",),          # batch grid shards across TCs
            vmem_limit_bytes=48 * 1024 * 1024,          # fits all gens incl. v7x (64 MiB)
        ),
        cost_estimate=cost,
    )(x, w1b, b1, w2b, b2, w3b, b3, w4b, b4)

    out = out[:B]
    # x.view(-1, 1, input_size, input_size)  (NCHW)
    out = out.reshape(B, output_channels, input_size, input_size)
    return out.astype(out_dtype)


def init_params(key, input_size=64, output_channels=1):
    """Deterministic init mirroring nn.Linear default (uniform +/- 1/sqrt(fan_in)).

    Weights stored as (in_features, out_features); biases as (1, out_features).
    """
    dims = [
        (input_size, 128),
        (128, 256),
        (256, 128),
        (128, input_size * input_size * output_channels),
    ]
    params = []
    for (fan_in, fan_out) in dims:
        key, kw, kb = jax.random.split(key, 3)
        bound = 1.0 / jnp.sqrt(fan_in)
        w = jax.random.uniform(kw, (fan_in, fan_out), jnp.float32, -bound, bound)
        b = jax.random.uniform(kb, (1, fan_out), jnp.float32, -bound, bound)
        params += [w, b]
    return tuple(params)


def prepare_params(params):
    """One-time cast of the weights to bf16 (outside the jitted forward)."""
    w1, b1, w2, b2, w3, b3, w4, b4 = params
    c = lambda w: w.astype(jnp.bfloat16)
    return (c(w1), b1, c(w2), b2, c(w3), b3, c(w4), b4)


def map_generator_ref(x, params, input_size=64, output_channels=1):
    """Pure-JAX f32 reference of the same forward pass (for correctness check)."""
    w1, b1, w2, b2, w3, b3, w4, b4 = params
    h = jnp.maximum(x @ w1 + b1, 0.0)
    h = jnp.maximum(h @ w2 + b2, 0.0)
    h = jnp.maximum(h @ w3 + b3, 0.0)
    h = jax.nn.sigmoid(h @ w4 + b4)
    return h.reshape(x.shape[0], output_channels, input_size, input_size)


INPUT_SIZE = 64  # MapGenerator default


if __name__ == "__main__":
    key = jax.random.PRNGKey(0)
    key, kx = jax.random.split(key)

    batch = 2
    x = jax.random.normal(kx, (batch, INPUT_SIZE), jnp.float32)
    params = init_params(key, input_size=INPUT_SIZE, output_channels=1)
    params_bf16 = prepare_params(params)   # one-time weight cast

    out = map_generator_forward(x, params_bf16, input_size=INPUT_SIZE,
                                output_channels=1)
    out = jax.block_until_ready(out)

    ref = map_generator_ref(x, params, input_size=INPUT_SIZE, output_channels=1)

    assert out.shape == (batch, 1, INPUT_SIZE, INPUT_SIZE), out.shape
    # bf16 MXU operands + bf16 output vs f32 reference => loosened tolerance
    # (sigmoid outputs live in [0,1], so abs error stays well under 2e-2).
    max_err = float(jnp.max(jnp.abs(out - ref)))
    assert max_err < 2e-2, f"mismatch vs reference (max abs err {max_err})"

    print("KERNEL_OK")
</pallas_src>

<mosaic_0001>
module attributes {stable_mosaic.version = 11 : i64} {
  func.func @_mlp_kernel(%arg0: i32, %arg1: memref<8x64xbf16, #tpu.memory_space<vmem>>, %arg2: memref<64x128xbf16, #tpu.memory_space<vmem>>, %arg3: memref<1x128xf32, #tpu.memory_space<vmem>>, %arg4: memref<128x256xbf16, #tpu.memory_space<vmem>>, %arg5: memref<1x256xf32, #tpu.memory_space<vmem>>, %arg6: memref<256x128xbf16, #tpu.memory_space<vmem>>, %arg7: memref<1x128xf32, #tpu.memory_space<vmem>>, %arg8: memref<128x4096xbf16, #tpu.memory_space<vmem>>, %arg9: memref<1x4096xf32, #tpu.memory_space<vmem>>, %arg10: memref<8x4096xbf16, #tpu.memory_space<vmem>>) attributes {dimension_semantics = [#tpu.dimension_semantics<parallel>], iteration_bounds = array<i64: 1>, scalar_prefetch = 0 : i64, scratch_operands = 0 : i64, tpu.core_type = #tpu.core_type<tc>, window_params = [{transform_indices = @transform_0, window_bounds = array<i64: 8, 64>}, {pipeline_mode = #tpu.pipeline_mode<synchronous>, transform_indices = @transform_1, window_bounds = array<i64: 64, 128>}, {pipeline_mode = #tpu.pipeline_mode<synchronous>, transform_indices = @transform_2, window_bounds = array<i64: 1, 128>}, {pipeline_mode = #tpu.pipeline_mode<synchronous>, transform_indices = @transform_3, window_bounds = array<i64: 128, 256>}, {pipeline_mode = #tpu.pipeline_mode<synchronous>, transform_indices = @transform_4, window_bounds = array<i64: 1, 256>}, {pipeline_mode = #tpu.pipeline_mode<synchronous>, transform_indices = @transform_5, window_bounds = array<i64: 256, 128>}, {pipeline_mode = #tpu.pipeline_mode<synchronous>, transform_indices = @transform_6, window_bounds = array<i64: 1, 128>}, {pipeline_mode = #tpu.pipeline_mode<synchronous>, transform_indices = @transform_7, window_bounds = array<i64: 128, 4096>}, {pipeline_mode = #tpu.pipeline_mode<synchronous>, transform_indices = @transform_8, window_bounds = array<i64: 1, 4096>}, {transform_indices = @transform_9, window_bounds = array<i64: 8, 4096>}]} {
    %c0 = arith.constant 0 : index
    %c0_0 = arith.constant 0 : index
    %0 = vector.load %arg1[%c0, %c0_0] : memref<8x64xbf16, #tpu.memory_space<vmem>>, vector<8x64xbf16>
    %c0_1 = arith.constant 0 : index
    %c0_2 = arith.constant 0 : index
    %1 = vector.load %arg2[%c0_1, %c0_2] : memref<64x128xbf16, #tpu.memory_space<vmem>>, vector<64x128xbf16>
    %cst = arith.constant dense<0.000000e+00> : vector<8x128xf32>
    %2 = tpu.matmul %0, %1, %cst {dimension_numbers = #tpu.dot_dimension_numbers<[1], [0], [0], [1], [0, 0, 1, 1], [], []>} : vector<8x64xbf16>, vector<64x128xbf16>, vector<8x128xf32> -> vector<8x128xf32>
    %c0_3 = arith.constant 0 : index
    %c0_4 = arith.constant 0 : index
    %3 = vector.load %arg3[%c0_3, %c0_4] : memref<1x128xf32, #tpu.memory_space<vmem>>, vector<1x128xf32>
    %4 = vector.broadcast %3 : vector<1x128xf32> to vector<8x128xf32>
    %5 = arith.addf %2, %4 : vector<8x128xf32>
    %cst_5 = arith.constant 0.000000e+00 : f32
    %6 = vector.broadcast %cst_5 : f32 to vector<8x128xf32>
    %7 = arith.maximumf %5, %6 : vector<8x128xf32>
    %8 = arith.truncf %7 : vector<8x128xf32> to vector<8x128xbf16>
    %c0_6 = arith.constant 0 : index
    %c0_7 = arith.constant 0 : index
    %9 = vector.load %arg4[%c0_6, %c0_7] : memref<128x256xbf16, #tpu.memory_space<vmem>>, vector<128x256xbf16>
    %cst_8 = arith.constant dense<0.000000e+00> : vector<8x256xf32>
    %10 = tpu.matmul %8, %9, %cst_8 {dimension_numbers = #tpu.dot_dimension_numbers<[1], [0], [0], [1], [0, 0, 1, 1], [], []>} : vector<8x128xbf16>, vector<128x256xbf16>, vector<8x256xf32> -> vector<8x256xf32>
    %c0_9 = arith.constant 0 : index
    %c0_10 = arith.constant 0 : index
    %11 = vector.load %arg5[%c0_9, %c0_10] : memref<1x256xf32, #tpu.memory_space<vmem>>, vector<1x256xf32>
    %12 = vector.broadcast %11 : vector<1x256xf32> to vector<8x256xf32>
    %13 = arith.addf %10, %12 : vector<8x256xf32>
    %cst_11 = arith.constant 0.000000e+00 : f32
    %14 = vector.broadcast %cst_11 : f32 to vector<8x256xf32>
    %15 = arith.maximumf %13, %14 : vector<8x256xf32>
    %16 = arith.truncf %15 : vector<8x256xf32> to vector<8x256xbf16>
    %c0_12 = arith.constant 0 : index
    %c0_13 = arith.constant 0 : index
    %17 = vector.load %arg6[%c0_12, %c0_13] : memref<256x128xbf16, #tpu.memory_space<vmem>>, vector<256x128xbf16>
    %cst_14 = arith.constant dense<0.000000e+00> : vector<8x128xf32>
    %18 = tpu.matmul %16, %17, %cst_14 {dimension_numbers = #tpu.dot_dimension_numbers<[1], [0], [0], [1], [0, 0, 1, 1], [], []>} : vector<8x256xbf16>, vector<256x128xbf16>, vector<8x128xf32> -> vector<8x128xf32>
    %c0_15 = arith.constant 0 : index
    %c0_16 = arith.constant 0 : index
    %19 = vector.load %arg7[%c0_15, %c0_16] : memref<1x128xf32, #tpu.memory_space<vmem>>, vector<1x128xf32>
    %20 = vector.broadcast %19 : vector<1x128xf32> to vector<8x128xf32>
    %21 = arith.addf %18, %20 : vector<8x128xf32>
    %cst_17 = arith.constant 0.000000e+00 : f32
    %22 = vector.broadcast %cst_17 : f32 to vector<8x128xf32>
    %23 = arith.maximumf %21, %22 : vector<8x128xf32>
    %24 = arith.truncf %23 : vector<8x128xf32> to vector<8x128xbf16>
    %c0_18 = arith.constant 0 : index
    %c0_19 = arith.constant 0 : index
    %25 = vector.load %arg8[%c0_18, %c0_19] : memref<128x4096xbf16, #tpu.memory_space<vmem>>, vector<128x4096xbf16>
    %cst_20 = arith.constant dense<0.000000e+00> : vector<8x4096xf32>
    %26 = tpu.matmul %24, %25, %cst_20 {dimension_numbers = #tpu.dot_dimension_numbers<[1], [0], [0], [1], [0, 0, 1, 1], [], []>} : vector<8x128xbf16>, vector<128x4096xbf16>, vector<8x4096xf32> -> vector<8x4096xf32>
    %c0_21 = arith.constant 0 : index
    %c0_22 = arith.constant 0 : index
    %27 = vector.load %arg9[%c0_21, %c0_22] : memref<1x4096xf32, #tpu.memory_space<vmem>>, vector<1x4096xf32>
    %28 = vector.broadcast %27 : vector<1x4096xf32> to vector<8x4096xf32>
    %29 = arith.addf %26, %28 : vector<8x4096xf32>
    %cst_23 = arith.constant 5.000000e-01 : f32
    %30 = vector.broadcast %cst_23 : f32 to vector<8x4096xf32>
    %31 = arith.mulf %30, %29 : vector<8x4096xf32>
    %32 = math.tanh %31 : vector<8x4096xf32>
    %cst_24 = arith.constant 1.000000e+00 : f32
    %33 = vector.broadcast %cst_24 : f32 to vector<8x4096xf32>
    %34 = arith.addf %32, %33 : vector<8x4096xf32>
    %cst_25 = arith.constant 5.000000e-01 : f32
    %35 = vector.broadcast %cst_25 : f32 to vector<8x4096xf32>
    %36 = arith.mulf %35, %34 : vector<8x4096xf32>
    %37 = arith.truncf %36 : vector<8x4096xf32> to vector<8x4096xbf16>
    %c0_26 = arith.constant 0 : index
    %c0_27 = arith.constant 0 : index
    %38 = vector.load %arg10[%c0_26, %c0_27] : memref<8x4096xbf16, #tpu.memory_space<vmem>>, vector<8x4096xbf16>
    tpu.vector_store %arg10[%c0_26, %c0_27], %37 {strides = array<i32>} : memref<8x4096xbf16, #tpu.memory_space<vmem>>, vector<8x4096xbf16>,
    return
  }
  func.func @transform_0(%arg0: i32) -> (i32, i32) {
    %c0_i32 = arith.constant 0 : i32
    %c0_i32_0 = arith.constant 0 : i32
    return %arg0, %c0_i32 : i32, i32
  }
  func.func @transform_1(%arg0: i32) -> (i32, i32) {
    %c0_i32 = arith.constant 0 : i32
    %c0_i32_0 = arith.constant 0 : i32
    %c0_i32_1 = arith.constant 0 : i32
    return %c0_i32, %c0_i32_0 : i32, i32
  }
  func.func @transform_2(%arg0: i32) -> (i32, i32) {
    %c0_i32 = arith.constant 0 : i32
    %c0_i32_0 = arith.constant 0 : i32
    %c0_i32_1 = arith.constant 0 : i32
    return %c0_i32, %c0_i32_0 : i32, i32
  }
  func.func @transform_3(%arg0: i32) -> (i32, i32) {
    %c0_i32 = arith.constant 0 : i32
    %c0_i32_0 = arith.constant 0 : i32
    %c0_i32_1 = arith.constant 0 : i32
    return %c0_i32, %c0_i32_0 : i32, i32
  }
  func.func @transform_4(%arg0: i32) -> (i32, i32) {
    %c0_i32 = arith.constant 0 : i32
    %c0_i32_0 = arith.constant 0 : i32
    %c0_i32_1 = arith.constant 0 : i32
    return %c0_i32, %c0_i32_0 : i32, i32
  }
  func.func @transform_5(%arg0: i32) -> (i32, i32) {
    %c0_i32 = arith.constant 0 : i32
    %c0_i32_0 = arith.constant 0 : i32
    %c0_i32_1 = arith.constant 0 : i32
    return %c0_i32, %c0_i32_0 : i32, i32
  }
  func.func @transform_6(%arg0: i32) -> (i32, i32) {
    %c0_i32 = arith.constant 0 : i32
    %c0_i32_0 = arith.constant 0 : i32
    %c0_i32_1 = arith.constant 0 : i32
    return %c0_i32, %c0_i32_0 : i32, i32
  }
  func.func @transform_7(%arg0: i32) -> (i32, i32) {
    %c0_i32 = arith.constant 0 : i32
    %c0_i32_0 = arith.constant 0 : i32
    %c0_i32_1 = arith.constant 0 : i32
    return %c0_i32, %c0_i32_0 : i32, i32
  }
  func.func @transform_8(%arg0: i32) -> (i32, i32) {
    %c0_i32 = arith.constant 0 : i32
    %c0_i32_0 = arith.constant 0 : i32
    %c0_i32_1 = arith.constant 0 : i32
    return %c0_i32, %c0_i32_0 : i32, i32
  }
  func.func @transform_9(%arg0: i32) -> (i32, i32) {
    %c0_i32 = arith.constant 0 : i32
    %c0_i32_0 = arith.constant 0 : i32
    return %arg0, %c0_i32 : i32, i32
  }
}

</mosaic_0001>

<llo_original>
// kernel: map_generator_forward.1
$region0: #{map_generator_forward.1}
  #allocation0 [shape = 'u32[]', space=smem, size = 0x4, offset = 0x4, fixed_abs, tag = 'smem constant byte address 0x4 - core index']
  #allocation1 [shape = 'u32[72,128]{1,0:T(1,128)}', space=vmem, size = 0x9000, scoped, tag = 'internal scratch']
  %s0 = inlined_call_operand.vmem [shape: bf16[8,64], index: 0, kind: input, shape index: {}]
  %s1 = inlined_call_operand.hbm [shape: bf16[64,128], index: 1, kind: input, shape index: {}]
  %s2 = inlined_call_operand.vmem [shape: f32[1,128], index: 2, kind: input, shape index: {}]
  %s3 = inlined_call_operand.hbm [shape: bf16[128,256], index: 3, kind: input, shape index: {}]
  %s4 = inlined_call_operand.vmem [shape: f32[1,256], index: 4, kind: input, shape index: {}]
  %s5 = inlined_call_operand.hbm [shape: bf16[256,128], index: 5, kind: input, shape index: {}]
  %s6 = inlined_call_operand.vmem [shape: f32[1,128], index: 6, kind: input, shape index: {}]
  %s7 = inlined_call_operand.hbm [shape: bf16[128,4096], index: 7, kind: input, shape index: {}]
  %s8 = inlined_call_operand.hbm [shape: f32[1,4096], index: 8, kind: input, shape index: {}]
  %s9 = inlined_call_operand.vmem [shape: bf16[8,4096], index: 9, kind: output, shape index: {}]
  %s10 = sld [smem:[#allocation0]]
  $region66: #{map_generator_forward.1} parent=0
    _
  %s12 = ssub.s32 1, %s10
  %s13 = scalar_select 0, %s12, %s10
  $region1: #{map_generator_forward.1} parent=0
    #allocation2 [shape = 'u8[16384]{0}', space=vmem, size = 0x4000, scoped, tag = 'input window, operand 1, single buffered']
    #allocation3 [shape = 's32[1]{0}', space=sflag, size = 0x4, scoped, tag = 'scoped memory for map_generator_forward.1']
    #allocation4 [shape = 'u8[65536]{0}', space=vmem, size = 0x10000, scoped, tag = 'input window, operand 3, single buffered']
    #allocation5 [shape = 's32[1]{0}', space=sflag, size = 0x4, scoped, tag = 'scoped memory for map_generator_forward.1']
    #allocation6 [shape = 'u8[65536]{0}', space=vmem, size = 0x10000, scoped, tag = 'input window, operand 5, single buffered']
    #allocation7 [shape = 'u8[1048576]{0}', space=vmem, size = 0x100000, scoped, tag = 'input window, operand 7, single buffered']
    #allocation8 [shape = 's32[1]{0}', space=sflag, size = 0x4, scoped, tag = 'scoped memory for map_generator_forward.1']
    #allocation9 [shape = 'u8[16384]{0}', space=vmem, size = 0x4000, scoped, tag = 'input window, operand 8, single buffered']
    %14 = vsyncpa [#allocation3], 0
    %15 = vsyncpa [#allocation5], 0
    %16 = vsyncpa [#allocation8], 0
    // Predicated region
    $region2: #{map_generator_forward.1} parent=1 // pred_check
      _
    $region3: #{map_generator_forward.1} parent=1 // pred_check_branch
      %18 = sbr.rel (0) target = $region5
    $region4: #{map_generator_forward.1} parent=1 // pred_region
      _
    $region5: #{map_generator_forward.1} parent=1 // pred_fallthru
      _
    // Predicated region
    $region6: #{map_generator_forward.1} parent=1 // pred_check
      _
    $region7: #{map_generator_forward.1} parent=1 // pred_check_branch
      %20 = sbr.rel (0) target = $region9
    $region8: #{map_generator_forward.1} parent=1 // pred_region
      %22 = vsyncadd [#allocation3], 0
      %s23 = sshll.u32 %s1, 4
      %s24 = int_to_ptr.hbm [resolvable:$true] %s23
      %s25 = sshll.u32 [#allocation2], 4
      %s26 = int_to_ptr.vmem [resolvable:$true] %s25
      %31 = dma.hbm_to_vmem [thread:$0]  %s24, 512, %s26, [#allocation3], 64, 64, 4
    $region9: #{map_generator_forward.1} parent=1 // pred_fallthru
      _
    // Predicated region
    $region10: #{map_generator_forward.1} parent=1 // pred_check
      _
    $region11: #{map_generator_forward.1} parent=1 // pred_check_branch
      %33 = sbr.rel (0) target = $region13
    $region12: #{map_generator_forward.1} parent=1 // pred_region
      _
    $region13: #{map_generator_forward.1} parent=1 // pred_fallthru
      _
    // Predicated region
    $region14: #{map_generator_forward.1} parent=1 // pred_check
      _
    $region15: #{map_generator_forward.1} parent=1 // pred_check_branch
      %35 = sbr.rel (0) target = $region17
    $region16: #{map_generator_forward.1} parent=1 // pred_region
      %37 = vsyncadd [#allocation5], 0
      %s38 = sshll.u32 %s3, 4
      %s39 = int_to_ptr.hbm [resolvable:$true] %s38
      %s40 = sshll.u32 [#allocation4], 4
      %s41 = int_to_ptr.vmem [resolvable:$true] %s40
      %46 = dma.hbm_to_vmem [thread:$0]  %s39, 2048, %s41, [#allocation5], 128, 128, 8
    $region17: #{map_generator_forward.1} parent=1 // pred_fallthru
      _
    // Predicated region
    $region18: #{map_generator_forward.1} parent=1 // pred_check
      _
    $region19: #{map_generator_forward.1} parent=1 // pred_check_branch
      %48 = sbr.rel (0) target = $region21
    $region20: #{map_generator_forward.1} parent=1 // pred_region
      _
    $region21: #{map_generator_forward.1} parent=1 // pred_fallthru
      _
    // Predicated region
    $region22: #{map_generator_forward.1} parent=1 // pred_check
      _
    $region23: #{map_generator_forward.1} parent=1 // pred_check_branch
      %50 = sbr.rel (0) target = $region25
    $region24: #{map_generator_forward.1} parent=1 // pred_region
      %52 = vsyncadd [#allocation5], 0
      %s53 = sshll.u32 %s5, 4
      %s54 = int_to_ptr.hbm [resolvable:$true] %s53
      %s55 = sshll.u32 [#allocation6], 4
      %s56 = int_to_ptr.vmem [resolvable:$true] %s55
      %61 = dma.hbm_to_vmem [thread:$0]  %s54, 2048, %s56, [#allocation5], 64, 64, 4
    $region25: #{map_generator_forward.1} parent=1 // pred_fallthru
      _
    // Predicated region
    $region26: #{map_generator_forward.1} parent=1 // pred_check
      _
    $region27: #{map_generator_forward.1} parent=1 // pred_check_branch
      %63 = sbr.rel (0) target = $region29
    $region28: #{map_generator_forward.1} parent=1 // pred_region
      _
    $region29: #{map_generator_forward.1} parent=1 // pred_fallthru
      _
    // Predicated region
    $region30: #{map_generator_forward.1} parent=1 // pred_check
      _
    $region31: #{map_generator_forward.1} parent=1 // pred_check_branch
      %65 = sbr.rel (0) target = $region33
    $region32: #{map_generator_forward.1} parent=1 // pred_region
      %67 = vsyncadd [#allocation8], 0
      %s68 = sshll.u32 %s7, 4
      %s69 = int_to_ptr.hbm [resolvable:$true] %s68
      %s70 = sshll.u32 [#allocation7], 4
      %s71 = int_to_ptr.vmem [resolvable:$true] %s70
      %76 = dma.hbm_to_vmem [thread:$0]  %s69, 32768, %s71, [#allocation8], 2048, 2048, 128
    $region33: #{map_generator_forward.1} parent=1 // pred_fallthru
      _
    // Predicated region
    $region34: #{map_generator_forward.1} parent=1 // pred_check
      _
    $region35: #{map_generator_forward.1} parent=1 // pred_check_branch
      %78 = sbr.rel (0) target = $region37
    $region36: #{map_generator_forward.1} parent=1 // pred_region
      %80 = vsyncadd [#allocation8], 0
      %s82 = sshll.u32 %s8, 4
      %s83 = int_to_ptr.hbm [resolvable:$true] %s82
      %s84 = sshll.u32 [#allocation9], 4
      %s85 = int_to_ptr.vmem [resolvable:$true] %s84
      %87 = dma.hbm_to_vmem [thread:$0]  %s83, 512, %s85, [#allocation8]
    $region37: #{map_generator_forward.1} parent=1 // pred_fallthru
      _
    // Predicated region
    $region38: #{map_generator_forward.1} parent=1 // pred_check
      _
    $region39: #{map_generator_forward.1} parent=1 // pred_check_branch
      %89 = sbr.rel (0) target = $region41
    $region40: #{map_generator_forward.1} parent=1 // pred_region
      %91 = dma.done [#allocation3], 512
    $region41: #{map_generator_forward.1} parent=1 // pred_fallthru
      _
    // Predicated region
    $region42: #{map_generator_forward.1} parent=1 // pred_check
      _
    $region43: #{map_generator_forward.1} parent=1 // pred_check_branch
      %93 = sbr.rel (0) target = $region45
    $region44: #{map_generator_forward.1} parent=1 // pred_region
      %95 = dma.done [#allocation5], 2048
    $region45: #{map_generator_forward.1} parent=1 // pred_fallthru
      _
    // Predicated region
    $region46: #{map_generator_forward.1} parent=1 // pred_check
      _
    $region47: #{map_generator_forward.1} parent=1 // pred_check_branch
      %97 = sbr.rel (0) target = $region49
    $region48: #{map_generator_forward.1} parent=1 // pred_region
      %99 = dma.done [#allocation5], 2048
    $region49: #{map_generator_forward.1} parent=1 // pred_fallthru
      _
    // Predicated region
    $region50: #{map_generator_forward.1} parent=1 // pred_check
      _
    $region51: #{map_generator_forward.1} parent=1 // pred_check_branch
      %101 = sbr.rel (0) target = $region53
    $region52: #{map_generator_forward.1} parent=1 // pred_region
      %103 = dma.done [#allocation8], 32768
    $region53: #{map_generator_forward.1} parent=1 // pred_fallthru
      _
    // Predicated region
    $region54: #{map_generator_forward.1} parent=1 // pred_check
      _
    $region55: #{map_generator_forward.1} parent=1 // pred_check_branch
      %105 = sbr.rel (0) target = $region57
    $region56: #{map_generator_forward.1} parent=1 // pred_region
      %107 = dma.done [#allocation8], 512
    $region57: #{map_generator_forward.1} parent=1 // pred_fallthru
      _
    %v109 = vld [vmem:[%s0] sm:$0xf]
    %v110 = vld [vmem:[#allocation2] sm:$0xf]
    %v111 = vld [vmem:[#allocation2 + $0x4] sm:$0xf]
    %v112 = vld [vmem:[#allocation2 + $0x8] sm:$0xf]
    %v113 = vld [vmem:[#allocation2 + $0xc] sm:$0xf]
    %v114 = vld [vmem:[#allocation2 + $0x10] sm:$0xf]
    %v115 = vld [vmem:[#allocation2 + $0x14] sm:$0xf]
    %v116 = vld [vmem:[#allocation2 + $0x18] sm:$0xf]
    %v117 = vld [vmem:[#allocation2 + $0x1c] sm:$0xf]
    %v118 = vld [vmem:[%s2] sm:$0x1]
    %v120 = vperm.slane %v118, 0
    %v130 = vunpack.c.l.b16 %v110
    %v131 = vunpack.c.l.b16 %v111
    %v132 = vunpack.c.l.b16 %v112
    %v133 = vunpack.c.l.b16 %v113
    %v134 = vunpack.c.l.b16 %v114
    %v135 = vunpack.c.l.b16 %v115
    %v136 = vunpack.c.l.b16 %v116
    %v137 = vunpack.c.l.b16 %v117
    %v138 = vpack.c.b16 %v131, %v130
    %v139 = vpack.c.b16 %v133, %v132
    %v140 = vpack.c.b16 %v135, %v134
    %v141 = vpack.c.b16 %v137, %v136
    %vm146 = vcmask 523264
    %v148 = vsel %vm146, %v109, 0
    %150 = vmatpush.bf16.msra.mxu0 0
    %151 = vmatpush.bf16.msra.mxu0 0
    %152 = vmatpush.bf16.msra.mxu0 0
    %153 = vmatpush.bf16.msra.mxu0 0
    %154 = vmatpush.bf16.msra.mxu0 %v141
    %155 = vmatpush.bf16.msra.mxu0 %v140
    %156 = vmatpush.bf16.msra.mxu0 %v139
    %157 = vmatpush.bf16.msra.mxu0 %v138
    %158 = vmatmul.bf16.gmra.mxu0 %v148
    %v159 = vpop.f32.mrf.mxu0
    %v160 = vadd.f32 %v120, %v159
    %v161 = vpop.f32.mrf.mxu0
    %162 = vdwg.mxu0
    %v163 = vmax.f32 %v160, 0.0
    %v164 = vpack.c.bf16 %v163, %v163
    %v165 = vld [vmem:[#allocation4] sm:$0xff]
    %v166 = vld [vmem:[#allocation4 + $0x8] sm:$0xff]
    %v167 = vld [vmem:[#allocation4 + $0x10] sm:$0xff]
    %v168 = vld [vmem:[#allocation4 + $0x18] sm:$0xff]
    %v169 = vld [vmem:[#allocation4 + $0x20] sm:$0xff]
    %v170 = vld [vmem:[#allocation4 + $0x28] sm:$0xff]
    %v171 = vld [vmem:[#allocation4 + $0x30] sm:$0xff]
    %v172 = vld [vmem:[#allocation4 + $0x38] sm:$0xff]
    %v173 = vld [vmem:[#allocation4 + $0x40] sm:$0xff]
    %v174 = vld [vmem:[#allocation4 + $0x48] sm:$0xff]
    %v175 = vld [vmem:[#allocation4 + $0x50] sm:$0xff]
    %v176 = vld [vmem:[#allocation4 + $0x58] sm:$0xff]
    %v177 = vld [vmem:[#allocation4 + $0x60] sm:$0xff]
    %v178 = vld [vmem:[#allocation4 + $0x68] sm:$0xff]
    %v179 = vld [vmem:[#allocation4 + $0x70] sm:$0xff]
    %v180 = vld [vmem:[#allocation4 + $0x78] sm:$0xff]
    %v181 = vld [vmem:[%s4] sm:$0x3]
    %v183 = vperm.slane %v181, 0
    %v184 = vperm.slane %v181, 1
    %v203 = vunpack.c.l.b16 %v165
    %v204 = vunpack.c.h.b16 %v165
    %v205 = vunpack.c.l.b16 %v166
    %v206 = vunpack.c.h.b16 %v166
    %v207 = vunpack.c.l.b16 %v167
    %v208 = vunpack.c.h.b16 %v167
    %v209 = vunpack.c.l.b16 %v168
    %v210 = vunpack.c.h.b16 %v168
    %v211 = vunpack.c.l.b16 %v169
    %v212 = vunpack.c.h.b16 %v169
    %v213 = vunpack.c.l.b16 %v170
    %v214 = vunpack.c.h.b16 %v170
    %v215 = vunpack.c.l.b16 %v171
    %v216 = vunpack.c.h.b16 %v171
    %v217 = vunpack.c.l.b16 %v172
    %v218 = vunpack.c.h.b16 %v172
    %v219 = vunpack.c.l.b16 %v173
    %v220 = vunpack.c.h.b16 %v173
    %v221 = vunpack.c.l.b16 %v174
    %v222 = vunpack.c.h.b16 %v174
    %v223 = vunpack.c.l.b16 %v175
    %v224 = vunpack.c.h.b16 %v175
    %v225 = vunpack.c.l.b16 %v176
    %v226 = vunpack.c.h.b16 %v176
    %v227 = vunpack.c.l.b16 %v177
    %v228 = vunpack.c.h.b16 %v177
    %v229 = vunpack.c.l.b16 %v178
    %v230 = vunpack.c.h.b16 %v178
    %v231 = vunpack.c.l.b16 %v179
    %v232 = vunpack.c.h.b16 %v179
    %v233 = vunpack.c.l.b16 %v180
    %v234 = vunpack.c.h.b16 %v180
    %v235 = vpack.c.b16 %v205, %v203
    %v236 = vpack.c.b16 %v206, %v204
    %v237 = vpack.c.b16 %v209, %v207
    %v238 = vpack.c.b16 %v210, %v208
    %v239 = vpack.c.b16 %v213, %v211
    %v240 = vpack.c.b16 %v214, %v212
    %v241 = vpack.c.b16 %v217, %v215
    %v242 = vpack.c.b16 %v218, %v216
    %v243 = vpack.c.b16 %v221, %v219
    %v244 = vpack.c.b16 %v222, %v220
    %v245 = vpack.c.b16 %v225, %v223
    %v246 = vpack.c.b16 %v226, %v224
    %v247 = vpack.c.b16 %v229, %v227
    %v248 = vpack.c.b16 %v230, %v228
    %v249 = vpack.c.b16 %v233, %v231
    %v250 = vpack.c.b16 %v234, %v232
    %267 = vmatpush.bf16.msra.mxu0 %v249
    %268 = vmatpush.bf16.msra.mxu0 %v247
    %269 = vmatpush.bf16.msra.mxu0 %v245
    %270 = vmatpush.bf16.msra.mxu0 %v243
    %271 = vmatpush.bf16.msra.mxu0 %v241
    %272 = vmatpush.bf16.msra.mxu0 %v239
    %273 = vmatpush.bf16.msra.mxu0 %v237
    %274 = vmatpush.bf16.msra.mxu0 %v235
    %275 = vmatmul.bf16.gmra.mxu0 %v164
    %v276 = vpop.f32.mrf.mxu0
    %v277 = vadd.f32 %v183, %v276
    %v278 = vpop.f32.mrf.mxu0
    %279 = vdwg.mxu0
    %280 = vmatpush.bf16.msra.mxu0 %v250
    %281 = vmatpush.bf16.msra.mxu0 %v248
    %282 = vmatpush.bf16.msra.mxu0 %v246
    %283 = vmatpush.bf16.msra.mxu0 %v244
    %284 = vmatpush.bf16.msra.mxu0 %v242
    %285 = vmatpush.bf16.msra.mxu0 %v240
    %286 = vmatpush.bf16.msra.mxu0 %v238
    %287 = vmatpush.bf16.msra.mxu0 %v236
    %288 = vmatmul.bf16.gmra.mxu0 %v164
    %v289 = vpop.f32.mrf.mxu0
    %v290 = vadd.f32 %v184, %v289
    %v291 = vpop.f32.mrf.mxu0
    %292 = vdwg.mxu0
    %v293 = vmax.f32 %v277, 0.0
    %v294 = vmax.f32 %v290, 0.0
    %v295 = vpack.c.bf16 %v293, %v293
    %v296 = vpack.c.bf16 %v294, %v294
    %v297 = vld [vmem:[#allocation6] sm:$0xf]
    %v298 = vld [vmem:[#allocation6 + $0x4] sm:$0xf]
    %v299 = vld [vmem:[#allocation6 + $0x8] sm:$0xf]
    %v300 = vld [vmem:[#allocation6 + $0xc] sm:$0xf]
    %v301 = vld [vmem:[#allocation6 + $0x10] sm:$0xf]
    %v302 = vld [vmem:[#allocation6 + $0x14] sm:$0xf]
    %v303 = vld [vmem:[#allocation6 + $0x18] sm:$0xf]
    %v304 = vld [vmem:[#allocation6 + $0x1c] sm:$0xf]
    %v305 = vld [vmem:[#allocation6 + $0x20] sm:$0xf]
    %v306 = vld [vmem:[#allocation6 + $0x24] sm:$0xf]
    %v307 = vld [vmem:[#allocation6 + $0x28] sm:$0xf]
    %v308 = vld [vmem:[#allocation6 + $0x2c] sm:$0xf]
    %v309 = vld [vmem:[#allocation6 + $0x30] sm:$0xf]
    %v310 = vld [vmem:[#allocation6 + $0x34] sm:$0xf]
    %v311 = vld [vmem:[#allocation6 + $0x38] sm:$0xf]
    %v312 = vld [vmem:[#allocation6 + $0x3c] sm:$0xf]
    %v313 = vld [vmem:[#allocation6 + $0x40] sm:$0xf]
    %v314 = vld [vmem:[#allocation6 + $0x44] sm:$0xf]
    %v315 = vld [vmem:[#allocation6 + $0x48] sm:$0xf]
    %v316 = vld [vmem:[#allocation6 + $0x4c] sm:$0xf]
    %v317 = vld [vmem:[#allocation6 + $0x50] sm:$0xf]
    %v318 = vld [vmem:[#allocation6 + $0x54] sm:$0xf]
    %v319 = vld [vmem:[#allocation6 + $0x58] sm:$0xf]
    %v320 = vld [vmem:[#allocation6 + $0x5c] sm:$0xf]
    %v321 = vld [vmem:[#allocation6 + $0x60] sm:$0xf]
    %v322 = vld [vmem:[#allocation6 + $0x64] sm:$0xf]
    %v323 = vld [vmem:[#allocation6 + $0x68] sm:$0xf]
    %v324 = vld [vmem:[#allocation6 + $0x6c] sm:$0xf]
    %v325 = vld [vmem:[#allocation6 + $0x70] sm:$0xf]
    %v326 = vld [vmem:[#allocation6 + $0x74] sm:$0xf]
    %v327 = vld [vmem:[#allocation6 + $0x78] sm:$0xf]
    %v328 = vld [vmem:[#allocation6 + $0x7c] sm:$0xf]
    %v329 = vld [vmem:[%s6] sm:$0x1]
    %v331 = vperm.slane %v329, 0
    %v365 = vunpack.c.l.b16 %v297
    %v366 = vunpack.c.l.b16 %v298
    %v367 = vunpack.c.l.b16 %v299
    %v368 = vunpack.c.l.b16 %v300
    %v369 = vunpack.c.l.b16 %v301
    %v370 = vunpack.c.l.b16 %v302
    %v371 = vunpack.c.l.b16 %v303
    %v372 = vunpack.c.l.b16 %v304
    %v373 = vunpack.c.l.b16 %v305
    %v374 = vunpack.c.l.b16 %v306
    %v375 = vunpack.c.l.b16 %v307
    %v376 = vunpack.c.l.b16 %v308
    %v377 = vunpack.c.l.b16 %v309
    %v378 = vunpack.c.l.b16 %v310
    %v379 = vunpack.c.l.b16 %v311
    %v380 = vunpack.c.l.b16 %v312
    %v381 = vunpack.c.l.b16 %v313
    %v382 = vunpack.c.l.b16 %v314
    %v383 = vunpack.c.l.b16 %v315
    %v384 = vunpack.c.l.b16 %v316
    %v385 = vunpack.c.l.b16 %v317
    %v386 = vunpack.c.l.b16 %v318
    %v387 = vunpack.c.l.b16 %v319
    %v388 = vunpack.c.l.b16 %v320
    %v389 = vunpack.c.l.b16 %v321
    %v390 = vunpack.c.l.b16 %v322
    %v391 = vunpack.c.l.b16 %v323
    %v392 = vunpack.c.l.b16 %v324
    %v393 = vunpack.c.l.b16 %v325
    %v394 = vunpack.c.l.b16 %v326
    %v395 = vunpack.c.l.b16 %v327
    %v396 = vunpack.c.l.b16 %v328
    %v397 = vpack.c.b16 %v366, %v365
    %v398 = vpack.c.b16 %v368, %v367
    %v399 = vpack.c.b16 %v370, %v369
    %v400 = vpack.c.b16 %v372, %v371
    %v401 = vpack.c.b16 %v374, %v373
    %v402 = vpack.c.b16 %v376, %v375
    %v403 = vpack.c.b16 %v378, %v377
    %v404 = vpack.c.b16 %v380, %v379
    %v405 = vpack.c.b16 %v382, %v381
    %v406 = vpack.c.b16 %v384, %v383
    %v407 = vpack.c.b16 %v386, %v385
    %v408 = vpack.c.b16 %v388, %v387
    %v409 = vpack.c.b16 %v390, %v389
    %v410 = vpack.c.b16 %v392, %v391
    %v411 = vpack.c.b16 %v394, %v393
    %v412 = vpack.c.b16 %v396, %v395
    %429 = vmatpush.bf16.msra.mxu0 %v404
    %430 = vmatpush.bf16.msra.mxu0 %v403
    %431 = vmatpush.bf16.msra.mxu0 %v402
    %432 = vmatpush.bf16.msra.mxu0 %v401
    %433 = vmatpush.bf16.msra.mxu0 %v400
    %434 = vmatpush.bf16.msra.mxu0 %v399
    %435 = vmatpush.bf16.msra.mxu0 %v398
    %436 = vmatpush.bf16.msra.mxu0 %v397
    %437 = vmatmul.bf16.gmra.mxu0 %v295
    %v438 = vpop.f32.mrf.mxu0
    %v439 = vadd.f32 %v331, %v438
    %v440 = vpop.f32.mrf.mxu0
    %441 = vdwg.mxu0
    %442 = vmatpush.bf16.msra.mxu0 %v412
    %443 = vmatpush.bf16.msra.mxu0 %v411
    %444 = vmatpush.bf16.msra.mxu0 %v410
    %445 = vmatpush.bf16.msra.mxu0 %v409
    %446 = vmatpush.bf16.msra.mxu0 %v408
    %447 = vmatpush.bf16.msra.mxu0 %v407
    %448 = vmatpush.bf16.msra.mxu0 %v406
    %449 = vmatpush.bf16.msra.mxu0 %v405
    %450 = vmatmul.bf16.gmra.mxu0 %v296
    %v451 = vpop.f32.mrf.mxu0
    %v452 = vadd.f32 %v439, %v451
    %v453 = vpop.f32.mrf.mxu0
    %454 = vdwg.mxu0
    %v455 = vmax.f32 %v452, 0.0
    %v456 = vpack.c.bf16 %v455, %v455
    %v457 = vld [vmem:[#allocation7] sm:$0xff]
    %v458 = vld [vmem:[#allocation7 + $0x8] sm:$0xff]
    %v459 = vld [vmem:[#allocation7 + $0x10] sm:$0xff]
    %v460 = vld [vmem:[#allocation7 + $0x18] sm:$0xff]
    %v461 = vld [vmem:[#allocation7 + $0x20] sm:$0xff]
    %v462 = vld [vmem:[#allocation7 + $0x28] sm:$0xff]
    %v463 = vld [vmem:[#allocation7 + $0x30] sm:$0xff]
    %v464 = vld [vmem:[#allocation7 + $0x38] sm:$0xff]
    %v465 = vld [vmem:[#allocation7 + $0x40] sm:$0xff]
    %v466 = vld [vmem:[#allocation7 + $0x48] sm:$0xff]
    %v467 = vld [vmem:[#allocation7 + $0x50] sm:$0xff]
    %v468 = vld [vmem:[#allocation7 + $0x58] sm:$0xff]
    %v469 = vld [vmem:[#allocation7 + $0x60] sm:$0xff]
    %v470 = vld [vmem:[#allocation7 + $0x68] sm:$0xff]
    %v471 = vld [vmem:[#allocation7 + $0x70] sm:$0xff]
    %v472 = vld [vmem:[#allocation7 + $0x78] sm:$0xff]
    %v473 = vld [vmem:[#allocation7 + $0x80] sm:$0xff]
    %v474 = vld [vmem:[#allocation7 + $0x88] sm:$0xff]
    %v475 = vld [vmem:[#allocation7 + $0x90] sm:$0xff]
    %v476 = vld [vmem:[#allocation7 + $0x98] sm:$0xff]
    %v477 = vld [vmem:[#allocation7 + $0xa0] sm:$0xff]
    %v478 = vld [vmem:[#allocation7 + $0xa8] sm:$0xff]
    %v479 = vld [vmem:[#allocation7 + $0xb0] sm:$0xff]
    %v480 = vld [vmem:[#allocation7 + $0xb8] sm:$0xff]
    %v481 = vld [vmem:[#allocation7 + $0xc0] sm:$0xff]
    %v482 = vld [vmem:[#allocation7 + $0xc8] sm:$0xff]
    %v483 = vld [vmem:[#allocation7 + $0xd0] sm:$0xff]
    %v484 = vld [vmem:[#allocation7 + $0xd8] sm:$0xff]
    %v485 = vld [vmem:[#allocation7 + $0xe0] sm:$0xff]
    %v486 = vld [vmem:[#allocation7 + $0xe8] sm:$0xff]
    %v487 = vld [vmem:[#allocation7 + $0xf0] sm:$0xff]
    %v488 = vld [vmem:[#allocation7 + $0xf8] sm:$0xff]
    %v489 = vld [vmem:[#allocation7 + $0x100] sm:$0xff]
    %v490 = vld [vmem:[#allocation7 + $0x108] sm:$0xff]
    %v491 = vld [vmem:[#allocation7 + $0x110] sm:$0xff]
    %v492 = vld [vmem:[#allocation7 + $0x118] sm:$0xff]
    %v493 = vld [vmem:[#allocation7 + $0x120] sm:$0xff]
    %v494 = vld [vmem:[#allocation7 + $0x128] sm:$0xff]
    %v495 = vld [vmem:[#allocation7 + $0x130] sm:$0xff]
    %v496 = vld [vmem:[#allocation7 + $0x138] sm:$0xff]
    %v497 = vld [vmem:[#allocation7 + $0x140] sm:$0xff]
    %v498 = vld [vmem:[#allocation7 + $0x148] sm:$0xff]
    %v499 = vld [vmem:[#allocation7 + $0x150] sm:$0xff]
    %v500 = vld [vmem:[#allocation7 + $0x158] sm:$0xff]
    %v501 = vld [vmem:[#allocation7 + $0x160] sm:$0xff]
    %v502 = vld [vmem:[#allocation7 + $0x168] sm:$0xff]
    %v503 = vld [vmem:[#allocation7 + $0x170] sm:$0xff]
    %v504 = vld [vmem:[#allocation7 + $0x178] sm:$0xff]
    %v505 = vld [vmem:[#allocation7 + $0x180] sm:$0xff]
    %v506 = vld [vmem:[#allocation7 + $0x188] sm:$0xff]
    %v507 = vld [vmem:[#allocation7 + $0x190] sm:$0xff]
    %v508 = vld [vmem:[#allocation7 + $0x198] sm:$0xff]
    %v509 = vld [vmem:[#allocation7 + $0x1a0] sm:$0xff]
    %v510 = vld [vmem:[#allocation7 + $0x1a8] sm:$0xff]
    %v511 = vld [vmem:[#allocation7 + $0x1b0] sm:$0xff]
    %v512 = vld [vmem:[#allocation7 + $0x1b8] sm:$0xff]
    %v513 = vld [vmem:[#allocation7 + $0x1c0] sm:$0xff]
    %v514 = vld [vmem:[#allocation7 + $0x1c8] sm:$0xff]
    %v515 = vld [vmem:[#allocation7 + $0x1d0] sm:$0xff]
    %v516 = vld [vmem:[#allocation7 + $0x1d8] sm:$0xff]
    %v517 = vld [vmem:[#allocation7 + $0x1e0] sm:$0xff]
    %v518 = vld [vmem:[#allocation7 + $0x1e8] sm:$0xff]
    %v519 = vld [vmem:[#allocation7 + $0x1f0] sm:$0xff]
    %v520 = vld [vmem:[#allocation7 + $0x1f8] sm:$0xff]
    %v521 = vld [vmem:[#allocation7 + $0x200] sm:$0xff]
    %v522 = vld [vmem:[#allocation7 + $0x208] sm:$0xff]
    %v523 = vld [vmem:[#allocation7 + $0x210] sm:$0xff]
    %v524 = vld [vmem:[#allocation7 + $0x218] sm:$0xff]
    %v525 = vld [vmem:[#allocation7 + $0x220] sm:$0xff]
    %v526 = vld [vmem:[#allocation7 + $0x228] sm:$0xff]
    %v527 = vld [vmem:[#allocation7 + $0x230] sm:$0xff]
    %v528 = vld [vmem:[#allocation7 + $0x238] sm:$0xff]
    %v529 = vld [vmem:[#allocation7 + $0x240] sm:$0xff]
    %v530 = vld [vmem:[#allocation7 + $0x248] sm:$0xff]
    %v531 = vld [vmem:[#allocation7 + $0x250] sm:$0xff]
    %v532 = vld [vmem:[#allocation7 + $0x258] sm:$0xff]
    %v533 = vld [vmem:[#allocation7 + $0x260] sm:$0xff]
    %v534 = vld [vmem:[#allocation7 + $0x268] sm:$0xff]
    %v535 = vld [vmem:[#allocation7 + $0x270] sm:$0xff]
    %v536 = vld [vmem:[#allocation7 + $0x278] sm:$0xff]
    %v537 = vld [vmem:[#allocation7 + $0x280] sm:$0xff]
    %v538 = vld [vmem:[#allocation7 + $0x288] sm:$0xff]
    %v539 = vld [vmem:[#allocation7 + $0x290] sm:$0xff]
    %v540 = vld [vmem:[#allocation7 + $0x298] sm:$0xff]
    %v541 = vld [vmem:[#allocation7 + $0x2a0] sm:$0xff]
    %v542 = vld [vmem:[#allocation7 + $0x2a8] sm:$0xff]
    %v543 = vld [vmem:[#allocation7 + $0x2b0] sm:$0xff]
    %v544 = vld [vmem:[#allocation7 + $0x2b8] sm:$0xff]
    %v545 = vld [vmem:[#allocation7 + $0x2c0] sm:$0xff]
    %v546 = vld [vmem:[#allocation7 + $0x2c8] sm:$0xff]
    %v547 = vld [vmem:[#allocation7 + $0x2d0] sm:$0xff]
    %v548 = vld [vmem:[#allocation7 + $0x2d8] sm:$0xff]
    %v549 = vld [vmem:[#allocation7 + $0x2e0] sm:$0xff]
    %v550 = vld [vmem:[#allocation7 + $0x2e8] sm:$0xff]
    %v551 = vld [vmem:[#allocation7 + $0x2f0] sm:$0xff]
    %v552 = vld [vmem:[#allocation7 + $0x2f8] sm:$0xff]
    %v553 = vld [vmem:[#allocation7 + $0x300] sm:$0xff]
    %v554 = vld [vmem:[#allocation7 + $0x308] sm:$0xff]
    %v555 = vld [vmem:[#allocation7 + $0x310] sm:$0xff]
    %v556 = vld [vmem:[#allocation7 + $0x318] sm:$0xff]
    %v557 = vld [vmem:[#allocation7 + $0x320] sm:$0xff]
    %v558 = vld [vmem:[#allocation7 + $0x328] sm:$0xff]
    %v559 = vld [vmem:[#allocation7 + $0x330] sm:$0xff]
    %v560 = vld [vmem:[#allocation7 + $0x338] sm:$0xff]
    %v561 = vld [vmem:[#allocation7 + $0x340] sm:$0xff]
    %v562 = vld [vmem:[#allocation7 + $0x348] sm:$0xff]
    %v563 = vld [vmem:[#allocation7 + $0x350] sm:$0xff]
    %v564 = vld [vmem:[#allocation7 + $0x358] sm:$0xff]
    %v565 = vld [vmem:[#allocation7 + $0x360] sm:$0xff]
    %v566 = vld [vmem:[#allocation7 + $0x368] sm:$0xff]
    %v567 = vld [vmem:[#allocation7 + $0x370] sm:$0xff]
    %v568 = vld [vmem:[#allocation7 + $0x378] sm:$0xff]
    %v569 = vld [vmem:[#allocation7 + $0x380] sm:$0xff]
    %v570 = vld [vmem:[#allocation7 + $0x388] sm:$0xff]
    %v571 = vld [vmem:[#allocation7 + $0x390] sm:$0xff]
    %v572 = vld [vmem:[#allocation7 + $0x398] sm:$0xff]
    %v573 = vld [vmem:[#allocation7 + $0x3a0] sm:$0xff]
    %v574 = vld [vmem:[#allocation7 + $0x3a8] sm:$0xff]
    %v575 = vld [vmem:[#allocation7 + $0x3b0] sm:$0xff]
    %v576 = vld [vmem:[#allocation7 + $0x3b8] sm:$0xff]
    %v577 = vld [vmem:[#allocation7 + $0x3c0] sm:$0xff]
    %v578 = vld [vmem:[#allocation7 + $0x3c8] sm:$0xff]
    %v579 = vld [vmem:[#allocation7 + $0x3d0] sm:$0xff]
    %v580 = vld [vmem:[#allocation7 + $0x3d8] sm:$0xff]
    %v581 = vld [vmem:[#allocation7 + $0x3e0] sm:$0xff]
    %v582 = vld [vmem:[#allocation7 + $0x3e8] sm:$0xff]
    %v583 = vld [vmem:[#allocation7 + $0x3f0] sm:$0xff]
    %v584 = vld [vmem:[#allocation7 + $0x3f8] sm:$0xff]
    %v585 = vld [vmem:[#allocation7 + $0x400] sm:$0xff]
    %v586 = vld [vmem:[#allocation7 + $0x408] sm:$0xff]
    %v587 = vld [vmem:[#allocation7 + $0x410] sm:$0xff]
    %v588 = vld [vmem:[#allocation7 + $0x418] sm:$0xff]
    %v589 = vld [vmem:[#allocation7 + $0x420] sm:$0xff]
    %v590 = vld [vmem:[#allocation7 + $0x428] sm:$0xff]
    %v591 = vld [vmem:[#allocation7 + $0x430] sm:$0xff]
    %v592 = vld [vmem:[#allocation7 + $0x438] sm:$0xff]
    %v593 = vld [vmem:[#allocation7 + $0x440] sm:$0xff]
    %v594 = vld [vmem:[#allocation7 + $0x448] sm:$0xff]
    %v595 = vld [vmem:[#allocation7 + $0x450] sm:$0xff]
    %v596 = vld [vmem:[#allocation7 + $0x458] sm:$0xff]
    %v597 = vld [vmem:[#allocation7 + $0x460] sm:$0xff]
    %v598 = vld [vmem:[#allocation7 + $0x468] sm:$0xff]
    %v599 = vld [vmem:[#allocation7 + $0x470] sm:$0xff]
    %v600 = vld [vmem:[#allocation7 + $0x478] sm:$0xff]
    %v601 = vld [vmem:[#allocation7 + $0x480] sm:$0xff]
    %v602 = vld [vmem:[#allocation7 + $0x488] sm:$0xff]
    %v603 = vld [vmem:[#allocation7 + $0x490] sm:$0xff]
    %v604 = vld [vmem:[#allocation7 + $0x498] sm:$0xff]
    %v605 = vld [vmem:[#allocation7 + $0x4a0] sm:$0xff]
    %v606 = vld [vmem:[#allocation7 + $0x4a8] sm:$0xff]
    %v607 = vld [vmem:[#allocation7 + $0x4b0] sm:$0xff]
    %v608 = vld [vmem:[#allocation7 + $0x4b8] sm:$0xff]
    %v609 = vld [vmem:[#allocation7 + $0x4c0] sm:$0xff]
    %v610 = vld [vmem:[#allocation7 + $0x4c8] sm:$0xff]
    %v611 = vld [vmem:[#allocation7 + $0x4d0] sm:$0xff]
    %v612 = vld [vmem:[#allocation7 + $0x4d8] sm:$0xff]
    %v613 = vld [vmem:[#allocation7 + $0x4e0] sm:$0xff]
    %v614 = vld [vmem:[#allocation7 + $0x4e8] sm:$0xff]
    %v615 = vld [vmem:[#allocation7 + $0x4f0] sm:$0xff]
    %v616 = vld [vmem:[#allocation7 + $0x4f8] sm:$0xff]
    %v617 = vld [vmem:[#allocation7 + $0x500] sm:$0xff]
    %v618 = vld [vmem:[#allocation7 + $0x508] sm:$0xff]
    %v619 = vld [vmem:[#allocation7 + $0x510] sm:$0xff]
    %v620 = vld [vmem:[#allocation7 + $0x518] sm:$0xff]
    %v621 = vld [vmem:[#allocation7 + $0x520] sm:$0xff]
    %v622 = vld [vmem:[#allocation7 + $0x528] sm:$0xff]
    %v623 = vld [vmem:[#allocation7 + $0x530] sm:$0xff]
    %v624 = vld [vmem:[#allocation7 + $0x538] sm:$0xff]
    %v625 = vld [vmem:[#allocation7 + $0x540] sm:$0xff]
    %v626 = vld [vmem:[#allocation7 + $0x548] sm:$0xff]
    %v627 = vld [vmem:[#allocation7 + $0x550] sm:$0xff]
    %v628 = vld [vmem:[#allocation7 + $0x558] sm:$0xff]
    %v629 = vld [vmem:[#allocation7 + $0x560] sm:$0xff]
    %v630 = vld [vmem:[#allocation7 + $0x568] sm:$0xff]
    %v631 = vld [vmem:[#allocation7 + $0x570] sm:$0xff]
    %v632 = vld [vmem:[#allocation7 + $0x578] sm:$0xff]
    %v633 = vld [vmem:[#allocation7 + $0x580] sm:$0xff]
    %v634 = vld [vmem:[#allocation7 + $0x588] sm:$0xff]
    %v635 = vld [vmem:[#allocation7 + $0x590] sm:$0xff]
    %v636 = vld [vmem:[#allocation7 + $0x598] sm:$0xff]
    %v637 = vld [vmem:[#allocation7 + $0x5a0] sm:$0xff]
    %v638 = vld [vmem:[#allocation7 + $0x5a8] sm:$0xff]
    %v639 = vld [vmem:[#allocation7 + $0x5b0] sm:$0xff]
    %v640 = vld [vmem:[#allocation7 + $0x5b8] sm:$0xff]
    %v641 = vld [vmem:[#allocation7 + $0x5c0] sm:$0xff]
    %v642 = vld [vmem:[#allocation7 + $0x5c8] sm:$0xff]
    %v643 = vld [vmem:[#allocation7 + $0x5d0] sm:$0xff]
    %v644 = vld [vmem:[#allocation7 + $0x5d8] sm:$0xff]
    %v645 = vld [vmem:[#allocation7 + $0x5e0] sm:$0xff]
    %v646 = vld [vmem:[#allocation7 + $0x5e8] sm:$0xff]
    %v647 = vld [vmem:[#allocation7 + $0x5f0] sm:$0xff]
    %v648 = vld [vmem:[#allocation7 + $0x5f8] sm:$0xff]
    %v649 = vld [vmem:[#allocation7 + $0x600] sm:$0xff]
    %v650 = vld [vmem:[#allocation7 + $0x608] sm:$0xff]
    %v651 = vld [vmem:[#allocation7 + $0x610] sm:$0xff]
    %v652 = vld [vmem:[#allocation7 + $0x618] sm:$0xff]
    %v653 = vld [vmem:[#allocation7 + $0x620] sm:$0xff]
    %v654 = vld [vmem:[#allocation7 + $0x628] sm:$0xff]
    %v655 = vld [vmem:[#allocation7 + $0x630] sm:$0xff]
    %v656 = vld [vmem:[#allocation7 + $0x638] sm:$0xff]
    %v657 = vld [vmem:[#allocation7 + $0x640] sm:$0xff]
    %v658 = vld [vmem:[#allocation7 + $0x648] sm:$0xff]
    %v659 = vld [vmem:[#allocation7 + $0x650] sm:$0xff]
    %v660 = vld [vmem:[#allocation7 + $0x658] sm:$0xff]
    %v661 = vld [vmem:[#allocation7 + $0x660] sm:$0xff]
    %v662 = vld [vmem:[#allocation7 + $0x668] sm:$0xff]
    %v663 = vld [vmem:[#allocation7 + $0x670] sm:$0xff]
    %v664 = vld [vmem:[#allocation7 + $0x678] sm:$0xff]
    %v665 = vld [vmem:[#allocation7 + $0x680] sm:$0xff]
    %v666 = vld [vmem:[#allocation7 + $0x688] sm:$0xff]
    %v667 = vld [vmem:[#allocation7 + $0x690] sm:$0xff]
    %v668 = vld [vmem:[#allocation7 + $0x698] sm:$0xff]
    %v669 = vld [vmem:[#allocation7 + $0x6a0] sm:$0xff]
    %v670 = vld [vmem:[#allocation7 + $0x6a8] sm:$0xff]
    %v671 = vld [vmem:[#allocation7 + $0x6b0] sm:$0xff]
    %v672 = vld [vmem:[#allocation7 + $0x6b8] sm:$0xff]
    %v673 = vld [vmem:[#allocation7 + $0x6c0] sm:$0xff]
    %v674 = vld [vmem:[#allocation7 + $0x6c8] sm:$0xff]
    %v675 = vld [vmem:[#allocation7 + $0x6d0] sm:$0xff]
    %v676 = vld [vmem:[#allocation7 + $0x6d8] sm:$0xff]
    %v677 = vld [vmem:[#allocation7 + $0x6e0] sm:$0xff]
    %v678 = vld [vmem:[#allocation7 + $0x6e8] sm:$0xff]
    %v679 = vld [vmem:[#allocation7 + $0x6f0] sm:$0xff]
    %v680 = vld [vmem:[#allocation7 + $0x6f8] sm:$0xff]
    %v681 = vld [vmem:[#allocation7 + $0x700] sm:$0xff]
    %v682 = vld [vmem:[#allocation7 + $0x708] sm:$0xff]
    %v683 = vld [vmem:[#allocation7 + $0x710] sm:$0xff]
    %v684 = vld [vmem:[#allocation7 + $0x718] sm:$0xff]
    %v685 = vld [vmem:[#allocation7 + $0x720] sm:$0xff]
    %v686 = vld [vmem:[#allocation7 + $0x728] sm:$0xff]
    %v687 = vld [vmem:[#allocation7 + $0x730] sm:$0xff]
    %v688 = vld [vmem:[#allocation7 + $0x738] sm:$0xff]
    %v689 = vld [vmem:[#allocation7 + $0x740] sm:$0xff]
    %v690 = vld [vmem:[#allocation7 + $0x748] sm:$0xff]
    %v691 = vld [vmem:[#allocation7 + $0x750] sm:$0xff]
    %v692 = vld [vmem:[#allocation7 + $0x758] sm:$0xff]
    %v693 = vld [vmem:[#allocation7 + $0x760] sm:$0xff]
    %v694 = vld [vmem:[#allocation7 + $0x768] sm:$0xff]
    %v695 = vld [vmem:[#allocation7 + $0x770] sm:$0xff]
    %v696 = vld [vmem:[#allocation7 + $0x778] sm:$0xff]
    %v697 = vld [vmem:[#allocation7 + $0x780] sm:$0xff]
    %v698 = vld [vmem:[#allocation7 + $0x788] sm:$0xff]
    %v699 = vld [vmem:[#allocation7 + $0x790] sm:$0xff]
    %v700 = vld [vmem:[#allocation7 + $0x798] sm:$0xff]
    %v701 = vld [vmem:[#allocation7 + $0x7a0] sm:$0xff]
    %v702 = vld [vmem:[#allocation7 + $0x7a8] sm:$0xff]
    %v703 = vld [vmem:[#allocation7 + $0x7b0] sm:$0xff]
    %v704 = vld [vmem:[#allocation7 + $0x7b8] sm:$0xff]
    %v705 = vld [vmem:[#allocation7 + $0x7c0] sm:$0xff]
    %v706 = vld [vmem:[#allocation7 + $0x7c8] sm:$0xff]
    %v707 = vld [vmem:[#allocation7 + $0x7d0] sm:$0xff]
    %v708 = vld [vmem:[#allocation7 + $0x7d8] sm:$0xff]
    %v709 = vld [vmem:[#allocation7 + $0x7e0] sm:$0xff]
    %v710 = vld [vmem:[#allocation7 + $0x7e8] sm:$0xff]
    %v711 = vld [vmem:[#allocation7 + $0x7f0] sm:$0xff]
    %v712 = vld [vmem:[#allocation7 + $0x7f8] sm:$0xff]
    %v713 = vld [vmem:[#allocation9] sm:$0xff]
    %v714 = vld [vmem:[#allocation9 + $0x8] sm:$0xff]
    %v715 = vld [vmem:[#allocation9 + $0x10] sm:$0xff]
    %v716 = vld [vmem:[#allocation9 + $0x18] sm:$0xff]
    %v721 = vperm.slane %v713, 0
    %v722 = vperm.slane %v713, 1
    %v723 = vperm.slane %v713, 2
    %v724 = vperm.slane %v713, 3
    %v725 = vperm.slane %v713, 4
    %v726 = vperm.slane %v713, 5
    %v727 = vperm.slane %v713, 6
    %v728 = vperm.slane %v713, 7
    %v729 = vperm.slane %v714, 0
    %v730 = vperm.slane %v714, 1
    %v731 = vperm.slane %v714, 2
    %v732 = vperm.slane %v714, 3
    %v733 = vperm.slane %v714, 4
    %v734 = vperm.slane %v714, 5
    %v735 = vperm.slane %v714, 6
    %v736 = vperm.slane %v714, 7
    %v737 = vperm.slane %v715, 0
    %v738 = vperm.slane %v715, 1
    %v739 = vperm.slane %v715, 2
    %v740 = vperm.slane %v715, 3
    %v741 = vperm.slane %v715, 4
    %v742 = vperm.slane %v715, 5
    %v743 = vperm.slane %v715, 6
    %v744 = vperm.slane %v715, 7
    %v745 = vperm.slane %v716, 0
    %v746 = vperm.slane %v716, 1
    %v747 = vperm.slane %v716, 2
    %v748 = vperm.slane %v716, 3
    %v749 = vperm.slane %v716, 4
    %v750 = vperm.slane %v716, 5
    %v751 = vperm.slane %v716, 6
    %v752 = vperm.slane %v716, 7
    %v1041 = vunpack.c.l.b16 %v457
    %v1042 = vunpack.c.h.b16 %v457
    %v1043 = vunpack.c.l.b16 %v458
    %v1044 = vunpack.c.h.b16 %v458
    %v1045 = vunpack.c.l.b16 %v459
    %v1046 = vunpack.c.h.b16 %v459
    %v1047 = vunpack.c.l.b16 %v460
    %v1048 = vunpack.c.h.b16 %v460
    %v1049 = vunpack.c.l.b16 %v461
    %v1050 = vunpack.c.h.b16 %v461
    %v1051 = vunpack.c.l.b16 %v462
    %v1052 = vunpack.c.h.b16 %v462
    %v1053 = vunpack.c.l.b16 %v463
    %v1054 = vunpack.c.h.b16 %v463
    %v1055 = vunpack.c.l.b16 %v464
    %v1056 = vunpack.c.h.b16 %v464
    %v1057 = vunpack.c.l.b16 %v465
    %v1058 = vunpack.c.h.b16 %v465
    %v1059 = vunpack.c.l.b16 %v466
    %v1060 = vunpack.c.h.b16 %v466
    %v1061 = vunpack.c.l.b16 %v467
    %v1062 = vunpack.c.h.b16 %v467
    %v1063 = vunpack.c.l.b16 %v468
    %v1064 = vunpack.c.h.b16 %v468
    %v1065 = vunpack.c.l.b16 %v469
    %v1066 = vunpack.c.h.b16 %v469
    %v1067 = vunpack.c.l.b16 %v470
    %v1068 = vunpack.c.h.b16 %v470
    %v1069 = vunpack.c.l.b16 %v471
    %v1070 = vunpack.c.h.b16 %v471
    %v1071 = vunpack.c.l.b16 %v472
    %v1072 = vunpack.c.h.b16 %v472
    %v1073 = vunpack.c.l.b16 %v473
    %v1074 = vunpack.c.h.b16 %v473
    %v1075 = vunpack.c.l.b16 %v474
    %v1076 = vunpack.c.h.b16 %v474
    %v1077 = vunpack.c.l.b16 %v475
    %v1078 = vunpack.c.h.b16 %v475
    %v1079 = vunpack.c.l.b16 %v476
    %v1080 = vunpack.c.h.b16 %v476
    %v1081 = vunpack.c.l.b16 %v477
    %v1082 = vunpack.c.h.b16 %v477
    %v1083 = vunpack.c.l.b16 %v478
    %v1084 = vunpack.c.h.b16 %v478
    %v1085 = vunpack.c.l.b16 %v479
    %v1086 = vunpack.c.h.b16 %v479
    %v1087 = vunpack.c.l.b16 %v480
    %v1088 = vunpack.c.h.b16 %v480
    %v1089 = vunpack.c.l.b16 %v481
    %v1090 = vunpack.c.h.b16 %v481
    %v1091 = vunpack.c.l.b16 %v482
    %v1092 = vunpack.c.h.b16 %v482
    %v1093 = vunpack.c.l.b16 %v483
    %v1094 = vunpack.c.h.b16 %v483
    %v1095 = vunpack.c.l.b16 %v484
    %v1096 = vunpack.c.h.b16 %v484
    %v1097 = vunpack.c.l.b16 %v485
    %v1098 = vunpack.c.h.b16 %v485
    %v1099 = vunpack.c.l.b16 %v486
    %v1100 = vunpack.c.h.b16 %v486
    %v1101 = vunpack.c.l.b16 %v487
    %v1102 = vunpack.c.h.b16 %v487
    %v1103 = vunpack.c.l.b16 %v488
    %v1104 = vunpack.c.h.b16 %v488
    %v1105 = vunpack.c.l.b16 %v489
    %v1106 = vunpack.c.h.b16 %v489
    %v1107 = vunpack.c.l.b16 %v490
    %v1108 = vunpack.c.h.b16 %v490
    %v1109 = vunpack.c.l.b16 %v491
    %v1110 = vunpack.c.h.b16 %v491
    %v1111 = vunpack.c.l.b16 %v492
    %v1112 = vunpack.c.h.b16 %v492
    %v1113 = vunpack.c.l.b16 %v493
    %v1114 = vunpack.c.h.b16 %v493
    %v1115 = vunpack.c.l.b16 %v494
    %v1116 = vunpack.c.h.b16 %v494
    %v1117 = vunpack.c.l.b16 %v495
    %v1118 = vunpack.c.h.b16 %v495
    %v1119 = vunpack.c.l.b16 %v496
    %v1120 = vunpack.c.h.b16 %v496
    %v1121 = vunpack.c.l.b16 %v497
    %v1122 = vunpack.c.h.b16 %v497
    %v1123 = vunpack.c.l.b16 %v498
    %v1124 = vunpack.c.h.b16 %v498
    %v1125 = vunpack.c.l.b16 %v499
    %v1126 = vunpack.c.h.b16 %v499
    %v1127 = vunpack.c.l.b16 %v500
    %v1128 = vunpack.c.h.b16 %v500
    %v1129 = vunpack.c.l.b16 %v501
    %v1130 = vunpack.c.h.b16 %v501
    %v1131 = vunpack.c.l.b16 %v502
    %v1132 = vunpack.c.h.b16 %v502
    %v1133 = vunpack.c.l.b16 %v503
    %v1134 = vunpack.c.h.b16 %v503
    %v1135 = vunpack.c.l.b16 %v504
    %v1136 = vunpack.c.h.b16 %v504
    %v1137 = vunpack.c.l.b16 %v505
    %v1138 = vunpack.c.h.b16 %v505
    %v1139 = vunpack.c.l.b16 %v506
    %v1140 = vunpack.c.h.b16 %v506
    %v1141 = vunpack.c.l.b16 %v507
    %v1142 = vunpack.c.h.b16 %v507
    %v1143 = vunpack.c.l.b16 %v508
    %v1144 = vunpack.c.h.b16 %v508
    %v1145 = vunpack.c.l.b16 %v509
    %v1146 = vunpack.c.h.b16 %v509
    %v1147 = vunpack.c.l.b16 %v510
    %v1148 = vunpack.c.h.b16 %v510
    %v1149 = vunpack.c.l.b16 %v511
    %v1150 = vunpack.c.h.b16 %v511
    %v1151 = vunpack.c.l.b16 %v512
    %v1152 = vunpack.c.h.b16 %v512
    %v1153 = vunpack.c.l.b16 %v513
    %v1154 = vunpack.c.h.b16 %v513
    %v1155 = vunpack.c.l.b16 %v514
    %v1156 = vunpack.c.h.b16 %v514
    %v1157 = vunpack.c.l.b16 %v515
    %v1158 = vunpack.c.h.b16 %v515
    %v1159 = vunpack.c.l.b16 %v516
    %v1160 = vunpack.c.h.b16 %v516
    %v1161 = vunpack.c.l.b16 %v517
    %v1162 = vunpack.c.h.b16 %v517
    %v1163 = vunpack.c.l.b16 %v518
    %v1164 = vunpack.c.h.b16 %v518
    %v1165 = vunpack.c.l.b16 %v519
    %v1166 = vunpack.c.h.b16 %v519
    %v1167 = vunpack.c.l.b16 %v520
    %v1168 = vunpack.c.h.b16 %v520
    %v1169 = vunpack.c.l.b16 %v521
    %v1170 = vunpack.c.h.b16 %v521
    %v1171 = vunpack.c.l.b16 %v522
    %v1172 = vunpack.c.h.b16 %v522
    %v1173 = vunpack.c.l.b16 %v523
    %v1174 = vunpack.c.h.b16 %v523
    %v1175 = vunpack.c.l.b16 %v524
    %v1176 = vunpack.c.h.b16 %v524
    %v1177 = vunpack.c.l.b16 %v525
    %v1178 = vunpack.c.h.b16 %v525
    %v1179 = vunpack.c.l.b16 %v526
    %v1180 = vunpack.c.h.b16 %v526
    %v1181 = vunpack.c.l.b16 %v527
    %v1182 = vunpack.c.h.b16 %v527
    %v1183 = vunpack.c.l.b16 %v528
    %v1184 = vunpack.c.h.b16 %v528
    %v1185 = vunpack.c.l.b16 %v529
    %v1186 = vunpack.c.h.b16 %v529
    %v1187 = vunpack.c.l.b16 %v530
    %v1188 = vunpack.c.h.b16 %v530
    %v1189 = vunpack.c.l.b16 %v531
    %v1190 = vunpack.c.h.b16 %v531
    %v1191 = vunpack.c.l.b16 %v532
    %v1192 = vunpack.c.h.b16 %v532
    %v1193 = vunpack.c.l.b16 %v533
    %v1194 = vunpack.c.h.b16 %v533
    %v1195 = vunpack.c.l.b16 %v534
    %v1196 = vunpack.c.h.b16 %v534
    %v1197 = vunpack.c.l.b16 %v535
    %v1198 = vunpack.c.h.b16 %v535
    %v1199 = vunpack.c.l.b16 %v536
    %v1200 = vunpack.c.h.b16 %v536
    %v1201 = vunpack.c.l.b16 %v537
    %v1202 = vunpack.c.h.b16 %v537
    %v1203 = vunpack.c.l.b16 %v538
    %v1204 = vunpack.c.h.b16 %v538
    %v1205 = vunpack.c.l.b16 %v539
    %v1206 = vunpack.c.h.b16 %v539
    %v1207 = vunpack.c.l.b16 %v540
    %v1208 = vunpack.c.h.b16 %v540
    %v1209 = vunpack.c.l.b16 %v541
    %v1210 = vunpack.c.h.b16 %v541
    %v1211 = vunpack.c.l.b16 %v542
    %v1212 = vunpack.c.h.b16 %v542
    %v1213 = vunpack.c.l.b16 %v543
    %v1214 = vunpack.c.h.b16 %v543
    %v1215 = vunpack.c.l.b16 %v544
    %v1216 = vunpack.c.h.b16 %v544
    %v1217 = vunpack.c.l.b16 %v545
    %v1218 = vunpack.c.h.b16 %v545
    %v1219 = vunpack.c.l.b16 %v546
    %v1220 = vunpack.c.h.b16 %v546
    %v1221 = vunpack.c.l.b16 %v547
    %v1222 = vunpack.c.h.b16 %v547
    %v1223 = vunpack.c.l.b16 %v548
    %v1224 = vunpack.c.h.b16 %v548
    %v1225 = vunpack.c.l.b16 %v549
    %v1226 = vunpack.c.h.b16 %v549
    %v1227 = vunpack.c.l.b16 %v550
    %v1228 = vunpack.c.h.b16 %v550
    %v1229 = vunpack.c.l.b16 %v551
    %v1230 = vunpack.c.h.b16 %v551
    %v1231 = vunpack.c.l.b16 %v552
    %v1232 = vunpack.c.h.b16 %v552
    %v1233 = vunpack.c.l.b16 %v553
    %v1234 = vunpack.c.h.b16 %v553
    %v1235 = vunpack.c.l.b16 %v554
    %v1236 = vunpack.c.h.b16 %v554
    %v1237 = vunpack.c.l.b16 %v555
    %v1238 = vunpack.c.h.b16 %v555
    %v1239 = vunpack.c.l.b16 %v556
    %v1240 = vunpack.c.h.b16 %v556
    %v1241 = vunpack.c.l.b16 %v557
    %v1242 = vunpack.c.h.b16 %v557
    %v1243 = vunpack.c.l.b16 %v558
    %v1244 = vunpack.c.h.b16 %v558
    %v1245 = vunpack.c.l.b16 %v559
    %v1246 = vunpack.c.h.b16 %v559
    %v1247 = vunpack.c.l.b16 %v560
    %v1248 = vunpack.c.h.b16 %v560
    %v1249 = vunpack.c.l.b16 %v561
    %v1250 = vunpack.c.h.b16 %v561
    %v1251 = vunpack.c.l.b16 %v562
    %v1252 = vunpack.c.h.b16 %v562
    %v1253 = vunpack.c.l.b16 %v563
    %v1254 = vunpack.c.h.b16 %v563
    %v1255 = vunpack.c.l.b16 %v564
    %v1256 = vunpack.c.h.b16 %v564
    %v1257 = vunpack.c.l.b16 %v565
    %v1258 = vunpack.c.h.b16 %v565
    %v1259 = vunpack.c.l.b16 %v566
    %v1260 = vunpack.c.h.b16 %v566
    %v1261 = vunpack.c.l.b16 %v567
    %v1262 = vunpack.c.h.b16 %v567
    %v1263 = vunpack.c.l.b16 %v568
    %v1264 = vunpack.c.h.b16 %v568
    %v1265 = vunpack.c.l.b16 %v569
    %v1266 = vunpack.c.h.b16 %v569
    %v1267 = vunpack.c.l.b16 %v570
    %v1268 = vunpack.c.h.b16 %v570
    %v1269 = vunpack.c.l.b16 %v571
    %v1270 = vunpack.c.h.b16 %v571
    %v1271 = vunpack.c.l.b16 %v572
    %v1272 = vunpack.c.h.b16 %v572
    %v1273 = vunpack.c.l.b16 %v573
    %v1274 = vunpack.c.h.b16 %v573
    %v1275 = vunpack.c.l.b16 %v574
    %v1276 = vunpack.c.h.b16 %v574
    %v1277 = vunpack.c.l.b16 %v575
    %v1278 = vunpack.c.h.b16 %v575
    %v1279 = vunpack.c.l.b16 %v576
    %v1280 = vunpack.c.h.b16 %v576
    %v1281 = vunpack.c.l.b16 %v577
    %v1282 = vunpack.c.h.b16 %v577
    %v1283 = vunpack.c.l.b16 %v578
    %v1284 = vunpack.c.h.b16 %v578
    %v1285 = vunpack.c.l.b16 %v579
    %v1286 = vunpack.c.h.b16 %v579
    %v1287 = vunpack.c.l.b16 %v580
    %v1288 = vunpack.c.h.b16 %v580
    %v1289 = vunpack.c.l.b16 %v581
    %v1290 = vunpack.c.h.b16 %v581
    %v1291 = vunpack.c.l.b16 %v582
    %v1292 = vunpack.c.h.b16 %v582
    %v1293 = vunpack.c.l.b16 %v583
    %v1294 = vunpack.c.h.b16 %v583
    %v1295 = vunpack.c.l.b16 %v584
    %v1296 = vunpack.c.h.b16 %v584
    %v1297 = vunpack.c.l.b16 %v585
    %v1298 = vunpack.c.h.b16 %v585
    %v1299 = vunpack.c.l.b16 %v586
    %v1300 = vunpack.c.h.b16 %v586
    %v1301 = vunpack.c.l.b16 %v587
    %v1302 = vunpack.c.h.b16 %v587
    %v1303 = vunpack.c.l.b16 %v588
    %v1304 = vunpack.c.h.b16 %v588
    %v1305 = vunpack.c.l.b16 %v589
    %v1306 = vunpack.c.h.b16 %v589
    %v1307 = vunpack.c.l.b16 %v590
    %v1308 = vunpack.c.h.b16 %v590
    %v1309 = vunpack.c.l.b16 %v591
    %v1310 = vunpack.c.h.b16 %v591
    %v1311 = vunpack.c.l.b16 %v592
    %v1312 = vunpack.c.h.b16 %v592
    %v1313 = vunpack.c.l.b16 %v593
    %v1314 = vunpack.c.h.b16 %v593
    %v1315 = vunpack.c.l.b16 %v594
    %v1316 = vunpack.c.h.b16 %v594
    %v1317 = vunpack.c.l.b16 %v595
    %v1318 = vunpack.c.h.b16 %v595
    %v1319 = vunpack.c.l.b16 %v596
    %v1320 = vunpack.c.h.b16 %v596
    %v1321 = vunpack.c.l.b16 %v597
    %v1322 = vunpack.c.h.b16 %v597
    %v1323 = vunpack.c.l.b16 %v598
    %v1324 = vunpack.c.h.b16 %v598
    %v1325 = vunpack.c.l.b16 %v599
    %v1326 = vunpack.c.h.b16 %v599
    %v1327 = vunpack.c.l.b16 %v600
    %v1328 = vunpack.c.h.b16 %v600
    %v1329 = vunpack.c.l.b16 %v601
    %v1330 = vunpack.c.h.b16 %v601
    %v1331 = vunpack.c.l.b16 %v602
    %v1332 = vunpack.c.h.b16 %v602
    %v1333 = vunpack.c.l.b16 %v603
    %v1334 = vunpack.c.h.b16 %v603
    %v1335 = vunpack.c.l.b16 %v604
    %v1336 = vunpack.c.h.b16 %v604
    %v1337 = vunpack.c.l.b16 %v605
    %v1338 = vunpack.c.h.b16 %v605
    %v1339 = vunpack.c.l.b16 %v606
    %v1340 = vunpack.c.h.b16 %v606
    %v1341 = vunpack.c.l.b16 %v607
    %v1342 = vunpack.c.h.b16 %v607
    %v1343 = vunpack.c.l.b16 %v608
    %v1344 = vunpack.c.h.b16 %v608
    %v1345 = vunpack.c.l.b16 %v609
    %v1346 = vunpack.c.h.b16 %v609
    %v1347 = vunpack.c.l.b16 %v610
    %v1348 = vunpack.c.h.b16 %v610
    %v1349 = vunpack.c.l.b16 %v611
    %v1350 = vunpack.c.h.b16 %v611
    %v1351 = vunpack.c.l.b16 %v612
    %v1352 = vunpack.c.h.b16 %v612
    %v1353 = vunpack.c.l.b16 %v613
    %v1354 = vunpack.c.h.b16 %v613
    %v1355 = vunpack.c.l.b16 %v614
    %v1356 = vunpack.c.h.b16 %v614
    %v1357 = vunpack.c.l.b16 %v615
    %v1358 = vunpack.c.h.b16 %v615
    %v1359 = vunpack.c.l.b16 %v616
    %v1360 = vunpack.c.h.b16 %v616
    %v1361 = vunpack.c.l.b16 %v617
    %v1362 = vunpack.c.h.b16 %v617
    %v1363 = vunpack.c.l.b16 %v618
    %v1364 = vunpack.c.h.b16 %v618
    %v1365 = vunpack.c.l.b16 %v619
    %v1366 = vunpack.c.h.b16 %v619
    %v1367 = vunpack.c.l.b16 %v620
    %v1368 = vunpack.c.h.b16 %v620
    %v1369 = vunpack.c.l.b16 %v621
    %v1370 = vunpack.c.h.b16 %v621
    %v1371 = vunpack.c.l.b16 %v622
    %v1372 = vunpack.c.h.b16 %v622
    %v1373 = vunpack.c.l.b16 %v623
    %v1374 = vunpack.c.h.b16 %v623
    %v1375 = vunpack.c.l.b16 %v624
    %v1376 = vunpack.c.h.b16 %v624
    %v1377 = vunpack.c.l.b16 %v625
    %v1378 = vunpack.c.h.b16 %v625
    %v1379 = vunpack.c.l.b16 %v626
    %v1380 = vunpack.c.h.b16 %v626
    %v1381 = vunpack.c.l.b16 %v627
    %v1382 = vunpack.c.h.b16 %v627
    %v1383 = vunpack.c.l.b16 %v628
    %v1384 = vunpack.c.h.b16 %v628
    %v1385 = vunpack.c.l.b16 %v629
    %v1386 = vunpack.c.h.b16 %v629
    %v1387 = vunpack.c.l.b16 %v630
    %v1388 = vunpack.c.h.b16 %v630
    %v1389 = vunpack.c.l.b16 %v631
    %v1390 = vunpack.c.h.b16 %v631
    %v1391 = vunpack.c.l.b16 %v632
    %v1392 = vunpack.c.h.b16 %v632
    %v1393 = vunpack.c.l.b16 %v633
    %v1394 = vunpack.c.h.b16 %v633
    %v1395 = vunpack.c.l.b16 %v634
    %v1396 = vunpack.c.h.b16 %v634
    %v1397 = vunpack.c.l.b16 %v635
    %v1398 = vunpack.c.h.b16 %v635
    %v1399 = vunpack.c.l.b16 %v636
    %v1400 = vunpack.c.h.b16 %v636
    %v1401 = vunpack.c.l.b16 %v637
    %v1402 = vunpack.c.h.b16 %v637
    %v1403 = vunpack.c.l.b16 %v638
    %v1404 = vunpack.c.h.b16 %v638
    %v1405 = vunpack.c.l.b16 %v639
    %v1406 = vunpack.c.h.b16 %v639
    %v1407 = vunpack.c.l.b16 %v640
    %v1408 = vunpack.c.h.b16 %v640
    %v1409 = vunpack.c.l.b16 %v641
    %v1410 = vunpack.c.h.b16 %v641
    %v1411 = vunpack.c.l.b16 %v642
    %v1412 = vunpack.c.h.b16 %v642
    %v1413 = vunpack.c.l.b16 %v643
    %v1414 = vunpack.c.h.b16 %v643
    %v1415 = vunpack.c.l.b16 %v644
    %v1416 = vunpack.c.h.b16 %v644
    %v1417 = vunpack.c.l.b16 %v645
    %v1418 = vunpack.c.h.b16 %v645
    %v1419 = vunpack.c.l.b16 %v646
    %v1420 = vunpack.c.h.b16 %v646
    %v1421 = vunpack.c.l.b16 %v647
    %v1422 = vunpack.c.h.b16 %v647
    %v1423 = vunpack.c.l.b16 %v648
    %v1424 = vunpack.c.h.b16 %v648
    %v1425 = vunpack.c.l.b16 %v649
    %v1426 = vunpack.c.h.b16 %v649
    %v1427 = vunpack.c.l.b16 %v650
    %v1428 = vunpack.c.h.b16 %v650
    %v1429 = vunpack.c.l.b16 %v651
    %v1430 = vunpack.c.h.b16 %v651
    %v1431 = vunpack.c.l.b16 %v652
    %v1432 = vunpack.c.h.b16 %v652
    %v1433 = vunpack.c.l.b16 %v653
    %v1434 = vunpack.c.h.b16 %v653
    %v1435 = vunpack.c.l.b16 %v654
    %v1436 = vunpack.c.h.b16 %v654
    %v1437 = vunpack.c.l.b16 %v655
    %v1438 = vunpack.c.h.b16 %v655
    %v1439 = vunpack.c.l.b16 %v656
    %v1440 = vunpack.c.h.b16 %v656
    %v1441 = vunpack.c.l.b16 %v657
    %v1442 = vunpack.c.h.b16 %v657
    %v1443 = vunpack.c.l.b16 %v658
    %v1444 = vunpack.c.h.b16 %v658
    %v1445 = vunpack.c.l.b16 %v659
    %v1446 = vunpack.c.h.b16 %v659
    %v1447 = vunpack.c.l.b16 %v660
    %v1448 = vunpack.c.h.b16 %v660
    %v1449 = vunpack.c.l.b16 %v661
    %v1450 = vunpack.c.h.b16 %v661
    %v1451 = vunpack.c.l.b16 %v662
    %v1452 = vunpack.c.h.b16 %v662
    %v1453 = vunpack.c.l.b16 %v663
    %v1454 = vunpack.c.h.b16 %v663
    %v1455 = vunpack.c.l.b16 %v664
    %v1456 = vunpack.c.h.b16 %v664
    %v1457 = vunpack.c.l.b16 %v665
    %v1458 = vunpack.c.h.b16 %v665
    %v1459 = vunpack.c.l.b16 %v666
    %v1460 = vunpack.c.h.b16 %v666
    %v1461 = vunpack.c.l.b16 %v667
    %v1462 = vunpack.c.h.b16 %v667
    %v1463 = vunpack.c.l.b16 %v668
    %v1464 = vunpack.c.h.b16 %v668
    %v1465 = vunpack.c.l.b16 %v669
    %v1466 = vunpack.c.h.b16 %v669
    %v1467 = vunpack.c.l.b16 %v670
    %v1468 = vunpack.c.h.b16 %v670
    %v1469 = vunpack.c.l.b16 %v671
    %v1470 = vunpack.c.h.b16 %v671
    %v1471 = vunpack.c.l.b16 %v672
    %v1472 = vunpack.c.h.b16 %v672
    %v1473 = vunpack.c.l.b16 %v673
    %v1474 = vunpack.c.h.b16 %v673
    %v1475 = vunpack.c.l.b16 %v674
    %v1476 = vunpack.c.h.b16 %v674
    %v1477 = vunpack.c.l.b16 %v675
    %v1478 = vunpack.c.h.b16 %v675
    %v1479 = vunpack.c.l.b16 %v676
    %v1480 = vunpack.c.h.b16 %v676
    %v1481 = vunpack.c.l.b16 %v677
    %v1482 = vunpack.c.h.b16 %v677
    %v1483 = vunpack.c.l.b16 %v678
    %v1484 = vunpack.c.h.b16 %v678
    %v1485 = vunpack.c.l.b16 %v679
    %v1486 = vunpack.c.h.b16 %v679
    %v1487 = vunpack.c.l.b16 %v680
    %v1488 = vunpack.c.h.b16 %v680
    %v1489 = vunpack.c.l.b16 %v681
    %v1490 = vunpack.c.h.b16 %v681
    %v1491 = vunpack.c.l.b16 %v682
    %v1492 = vunpack.c.h.b16 %v682
    %v1493 = vunpack.c.l.b16 %v683
    %v1494 = vunpack.c.h.b16 %v683
    %v1495 = vunpack.c.l.b16 %v684
    %v1496 = vunpack.c.h.b16 %v684
    %v1497 = vunpack.c.l.b16 %v685
    %v1498 = vunpack.c.h.b16 %v685
    %v1499 = vunpack.c.l.b16 %v686
    %v1500 = vunpack.c.h.b16 %v686
    %v1501 = vunpack.c.l.b16 %v687
    %v1502 = vunpack.c.h.b16 %v687
    %v1503 = vunpack.c.l.b16 %v688
    %v1504 = vunpack.c.h.b16 %v688
    %v1505 = vunpack.c.l.b16 %v689
    %v1506 = vunpack.c.h.b16 %v689
    %v1507 = vunpack.c.l.b16 %v690
    %v1508 = vunpack.c.h.b16 %v690
    %v1509 = vunpack.c.l.b16 %v691
    %v1510 = vunpack.c.h.b16 %v691
    %v1511 = vunpack.c.l.b16 %v692
    %v1512 = vunpack.c.h.b16 %v692
    %v1513 = vunpack.c.l.b16 %v693
    %v1514 = vunpack.c.h.b16 %v693
    %v1515 = vunpack.c.l.b16 %v694
    %v1516 = vunpack.c.h.b16 %v694
    %v1517 = vunpack.c.l.b16 %v695
    %v1518 = vunpack.c.h.b16 %v695
    %v1519 = vunpack.c.l.b16 %v696
    %v1520 = vunpack.c.h.b16 %v696
    %v1521 = vunpack.c.l.b16 %v697
    %v1522 = vunpack.c.h.b16 %v697
    %v1523 = vunpack.c.l.b16 %v698
    %v1524 = vunpack.c.h.b16 %v698
    %v1525 = vunpack.c.l.b16 %v699
    %v1526 = vunpack.c.h.b16 %v699
    %v1527 = vunpack.c.l.b16 %v700
    %v1528 = vunpack.c.h.b16 %v700
    %v1529 = vunpack.c.l.b16 %v701
    %v1530 = vunpack.c.h.b16 %v701
    %v1531 = vunpack.c.l.b16 %v702
    %v1532 = vunpack.c.h.b16 %v702
    %v1533 = vunpack.c.l.b16 %v703
    %v1534 = vunpack.c.h.b16 %v703
    %v1535 = vunpack.c.l.b16 %v704
    %v1536 = vunpack.c.h.b16 %v704
    %v1537 = vunpack.c.l.b16 %v705
    %v1538 = vunpack.c.h.b16 %v705
    %v1539 = vunpack.c.l.b16 %v706
    %v1540 = vunpack.c.h.b16 %v706
    %v1541 = vunpack.c.l.b16 %v707
    %v1542 = vunpack.c.h.b16 %v707
    %v1543 = vunpack.c.l.b16 %v708
    %v1544 = vunpack.c.h.b16 %v708
    %v1545 = vunpack.c.l.b16 %v709
    %v1546 = vunpack.c.h.b16 %v709
    %v1547 = vunpack.c.l.b16 %v710
    %v1548 = vunpack.c.h.b16 %v710
    %v1549 = vunpack.c.l.b16 %v711
    %v1550 = vunpack.c.h.b16 %v711
    %v1551 = vunpack.c.l.b16 %v712
    %v1552 = vunpack.c.h.b16 %v712
    %v1553 = vpack.c.b16 %v1073, %v1041
    %v1554 = vpack.c.b16 %v1074, %v1042
    %v1555 = vpack.c.b16 %v1075, %v1043
    %v1556 = vpack.c.b16 %v1076, %v1044
    %v1557 = vpack.c.b16 %v1077, %v1045
    %v1558 = vpack.c.b16 %v1078, %v1046
    %v1559 = vpack.c.b16 %v1079, %v1047
    %v1560 = vpack.c.b16 %v1080, %v1048
    %v1561 = vpack.c.b16 %v1081, %v1049
    %v1562 = vpack.c.b16 %v1082, %v1050
    %v1563 = vpack.c.b16 %v1083, %v1051
    %v1564 = vpack.c.b16 %v1084, %v1052
    %v1565 = vpack.c.b16 %v1085, %v1053
    %v1566 = vpack.c.b16 %v1086, %v1054
    %v1567 = vpack.c.b16 %v1087, %v1055
    %v1568 = vpack.c.b16 %v1088, %v1056
    %v1569 = vpack.c.b16 %v1089, %v1057
    %v1570 = vpack.c.b16 %v1090, %v1058
    %v1571 = vpack.c.b16 %v1091, %v1059
    %v1572 = vpack.c.b16 %v1092, %v1060
    %v1573 = vpack.c.b16 %v1093, %v1061
    %v1574 = vpack.c.b16 %v1094, %v1062
    %v1575 = vpack.c.b16 %v1095, %v1063
    %v1576 = vpack.c.b16 %v1096, %v1064
    %v1577 = vpack.c.b16 %v1097, %v1065
    %v1578 = vpack.c.b16 %v1098, %v1066
    %v1579 = vpack.c.b16 %v1099, %v1067
    %v1580 = vpack.c.b16 %v1100, %v1068
    %v1581 = vpack.c.b16 %v1101, %v1069
    %v1582 = vpack.c.b16 %v1102, %v1070
    %v1583 = vpack.c.b16 %v1103, %v1071
    %v1584 = vpack.c.b16 %v1104, %v1072
    %v1585 = vpack.c.b16 %v1137, %v1105
    %v1586 = vpack.c.b16 %v1138, %v1106
    %v1587 = vpack.c.b16 %v1139, %v1107
    %v1588 = vpack.c.b16 %v1140, %v1108
    %v1589 = vpack.c.b16 %v1141, %v1109
    %v1590 = vpack.c.b16 %v1142, %v1110
    %v1591 = vpack.c.b16 %v1143, %v1111
    %v1592 = vpack.c.b16 %v1144, %v1112
    %v1593 = vpack.c.b16 %v1145, %v1113
    %v1594 = vpack.c.b16 %v1146, %v1114
    %v1595 = vpack.c.b16 %v1147, %v1115
    %v1596 = vpack.c.b16 %v1148, %v1116
    %v1597 = vpack.c.b16 %v1149, %v1117
    %v1598 = vpack.c.b16 %v1150, %v1118
    %v1599 = vpack.c.b16 %v1151, %v1119
    %v1600 = vpack.c.b16 %v1152, %v1120
    %v1601 = vpack.c.b16 %v1153, %v1121
    %v1602 = vpack.c.b16 %v1154, %v1122
    %v1603 = vpack.c.b16 %v1155, %v1123
    %v1604 = vpack.c.b16 %v1156, %v1124
    %v1605 = vpack.c.b16 %v1157, %v1125
    %v1606 = vpack.c.b16 %v1158, %v1126
    %v1607 = vpack.c.b16 %v1159, %v1127
    %v1608 = vpack.c.b16 %v1160, %v1128
    %v1609 = vpack.c.b16 %v1161, %v1129
    %v1610 = vpack.c.b16 %v1162, %v1130
    %v1611 = vpack.c.b16 %v1163, %v1131
    %v1612 = vpack.c.b16 %v1164, %v1132
    %v1613 = vpack.c.b16 %v1165, %v1133
    %v1614 = vpack.c.b16 %v1166, %v1134
    %v1615 = vpack.c.b16 %v1167, %v1135
    %v1616 = vpack.c.b16 %v1168, %v1136
    %v1617 = vpack.c.b16 %v1201, %v1169
    %v1618 = vpack.c.b16 %v1202, %v1170
    %v1619 = vpack.c.b16 %v1203, %v1171
    %v1620 = vpack.c.b16 %v1204, %v1172
    %v1621 = vpack.c.b16 %v1205, %v1173
    %v1622 = vpack.c.b16 %v1206, %v1174
    %v1623 = vpack.c.b16 %v1207, %v1175
    %v1624 = vpack.c.b16 %v1208, %v1176
    %v1625 = vpack.c.b16 %v1209, %v1177
    %v1626 = vpack.c.b16 %v1210, %v1178
    %v1627 = vpack.c.b16 %v1211, %v1179
    %v1628 = vpack.c.b16 %v1212, %v1180
    %v1629 = vpack.c.b16 %v1213, %v1181
    %v1630 = vpack.c.b16 %v1214, %v1182
    %v1631 = vpack.c.b16 %v1215, %v1183
    %v1632 = vpack.c.b16 %v1216, %v1184
    %v1633 = vpack.c.b16 %v1217, %v1185
    %v1634 = vpack.c.b16 %v1218, %v1186
    %v1635 = vpack.c.b16 %v1219, %v1187
    %v1636 = vpack.c.b16 %v1220, %v1188
    %v1637 = vpack.c.b16 %v1221, %v1189
    %v1638 = vpack.c.b16 %v1222, %v1190
    %v1639 = vpack.c.b16 %v1223, %v1191
    %v1640 = vpack.c.b16 %v1224, %v1192
    %v1641 = vpack.c.b16 %v1225, %v1193
    %v1642 = vpack.c.b16 %v1226, %v1194
    %v1643 = vpack.c.b16 %v1227, %v1195
    %v1644 = vpack.c.b16 %v1228, %v1196
    %v1645 = vpack.c.b16 %v1229, %v1197
    %v1646 = vpack.c.b16 %v1230, %v1198
    %v1647 = vpack.c.b16 %v1231, %v1199
    %v1648 = vpack.c.b16 %v1232, %v1200
    %v1649 = vpack.c.b16 %v1265, %v1233
    %v1650 = vpack.c.b16 %v1266, %v1234
    %v1651 = vpack.c.b16 %v1267, %v1235
    %v1652 = vpack.c.b16 %v1268, %v1236
    %v1653 = vpack.c.b16 %v1269, %v1237
    %v1654 = vpack.c.b16 %v1270, %v1238
    %v1655 = vpack.c.b16 %v1271, %v1239
    %v1656 = vpack.c.b16 %v1272, %v1240
    %v1657 = vpack.c.b16 %v1273, %v1241
    %v1658 = vpack.c.b16 %v1274, %v1242
    %v1659 = vpack.c.b16 %v1275, %v1243
    %v1660 = vpack.c.b16 %v1276, %v1244
    %v1661 = vpack.c.b16 %v1277, %v1245
    %v1662 = vpack.c.b16 %v1278, %v1246
    %v1663 = vpack.c.b16 %v1279, %v1247
    %v1664 = vpack.c.b16 %v1280, %v1248
    %v1665 = vpack.c.b16 %v1281, %v1249
    %v1666 = vpack.c.b16 %v1282, %v1250
    %v1667 = vpack.c.b16 %v1283, %v1251
    %v1668 = vpack.c.b16 %v1284, %v1252
    %v1669 = vpack.c.b16 %v1285, %v1253
    %v1670 = vpack.c.b16 %v1286, %v1254
    %v1671 = vpack.c.b16 %v1287, %v1255
    %v1672 = vpack.c.b16 %v1288, %v1256
    %v1673 = vpack.c.b16 %v1289, %v1257
    %v1674 = vpack.c.b16 %v1290, %v1258
    %v1675 = vpack.c.b16 %v1291, %v1259
    %v1676 = vpack.c.b16 %v1292, %v1260
    %v1677 = vpack.c.b16 %v1293, %v1261
    %v1678 = vpack.c.b16 %v1294, %v1262
    %v1679 = vpack.c.b16 %v1295, %v1263
    %v1680 = vpack.c.b16 %v1296, %v1264
    %v1681 = vpack.c.b16 %v1329, %v1297
    %v1682 = vpack.c.b16 %v1330, %v1298
    %v1683 = vpack.c.b16 %v1331, %v1299
    %v1684 = vpack.c.b16 %v1332, %v1300
    %v1685 = vpack.c.b16 %v1333, %v1301
    %v1686 = vpack.c.b16 %v1334, %v1302
    %v1687 = vpack.c.b16 %v1335, %v1303
    %v1688 = vpack.c.b16 %v1336, %v1304
    %v1689 = vpack.c.b16 %v1337, %v1305
    %v1690 = vpack.c.b16 %v1338, %v1306
    %v1691 = vpack.c.b16 %v1339, %v1307
    %v1692 = vpack.c.b16 %v1340, %v1308
    %v1693 = vpack.c.b16 %v1341, %v1309
    %v1694 = vpack.c.b16 %v1342, %v1310
    %v1695 = vpack.c.b16 %v1343, %v1311
    %v1696 = vpack.c.b16 %v1344, %v1312
    %v1697 = vpack.c.b16 %v1345, %v1313
    %v1698 = vpack.c.b16 %v1346, %v1314
    %v1699 = vpack.c.b16 %v1347, %v1315
    %v1700 = vpack.c.b16 %v1348, %v1316
    %v1701 = vpack.c.b16 %v1349, %v1317
    %v1702 = vpack.c.b16 %v1350, %v1318
    %v1703 = vpack.c.b16 %v1351, %v1319
    %v1704 = vpack.c.b16 %v1352, %v1320
    %v1705 = vpack.c.b16 %v1353, %v1321
    %v1706 = vpack.c.b16 %v1354, %v1322
    %v1707 = vpack.c.b16 %v1355, %v1323
    %v1708 = vpack.c.b16 %v1356, %v1324
    %v1709 = vpack.c.b16 %v1357, %v1325
    %v1710 = vpack.c.b16 %v1358, %v1326
    %v1711 = vpack.c.b16 %v1359, %v1327
    %v1712 = vpack.c.b16 %v1360, %v1328
    %v1713 = vpack.c.b16 %v1393, %v1361
    %v1714 = vpack.c.b16 %v1394, %v1362
    %v1715 = vpack.c.b16 %v1395, %v1363
    %v1716 = vpack.c.b16 %v1396, %v1364
    %v1717 = vpack.c.b16 %v1397, %v1365
    %v1718 = vpack.c.b16 %v1398, %v1366
    %v1719 = vpack.c.b16 %v1399, %v1367
    %v1720 = vpack.c.b16 %v1400, %v1368
    %v1721 = vpack.c.b16 %v1401, %v1369
    %v1722 = vpack.c.b16 %v1402, %v1370
    %v1723 = vpack.c.b16 %v1403, %v1371
    %v1724 = vpack.c.b16 %v1404, %v1372
    %v1725 = vpack.c.b16 %v1405, %v1373
    %v1726 = vpack.c.b16 %v1406, %v1374
    %v1727 = vpack.c.b16 %v1407, %v1375
    %v1728 = vpack.c.b16 %v1408, %v1376
    %v1729 = vpack.c.b16 %v1409, %v1377
    %v1730 = vpack.c.b16 %v1410, %v1378
    %v1731 = vpack.c.b16 %v1411, %v1379
    %v1732 = vpack.c.b16 %v1412, %v1380
    %v1733 = vpack.c.b16 %v1413, %v1381
    %v1734 = vpack.c.b16 %v1414, %v1382
    %v1735 = vpack.c.b16 %v1415, %v1383
    %v1736 = vpack.c.b16 %v1416, %v1384
    %v1737 = vpack.c.b16 %v1417, %v1385
    %v1738 = vpack.c.b16 %v1418, %v1386
    %v1739 = vpack.c.b16 %v1419, %v1387
    %v1740 = vpack.c.b16 %v1420, %v1388
    %v1741 = vpack.c.b16 %v1421, %v1389
    %v1742 = vpack.c.b16 %v1422, %v1390
    %v1743 = vpack.c.b16 %v1423, %v1391
    %v1744 = vpack.c.b16 %v1424, %v1392
    %v1745 = vpack.c.b16 %v1457, %v1425
    %v1746 = vpack.c.b16 %v1458, %v1426
    %v1747 = vpack.c.b16 %v1459, %v1427
    %v1748 = vpack.c.b16 %v1460, %v1428
    %v1749 = vpack.c.b16 %v1461, %v1429
    %v1750 = vpack.c.b16 %v1462, %v1430
    %v1751 = vpack.c.b16 %v1463, %v1431
    %v1752 = vpack.c.b16 %v1464, %v1432
    %v1753 = vpack.c.b16 %v1465, %v1433
    %v1754 = vpack.c.b16 %v1466, %v1434
    %v1755 = vpack.c.b16 %v1467, %v1435
    %v1756 = vpack.c.b16 %v1468, %v1436
    %v1757 = vpack.c.b16 %v1469, %v1437
    %v1758 = vpack.c.b16 %v1470, %v1438
    %v1759 = vpack.c.b16 %v1471, %v1439
    %v1760 = vpack.c.b16 %v1472, %v1440
    %v1761 = vpack.c.b16 %v1473, %v1441
    %v1762 = vpack.c.b16 %v1474, %v1442
    %v1763 = vpack.c.b16 %v1475, %v1443
    %v1764 = vpack.c.b16 %v1476, %v1444
    %v1765 = vpack.c.b16 %v1477, %v1445
    %v1766 = vpack.c.b16 %v1478, %v1446
    %v1767 = vpack.c.b16 %v1479, %v1447
    %v1768 = vpack.c.b16 %v1480, %v1448
    %v1769 = vpack.c.b16 %v1481, %v1449
    %v1770 = vpack.c.b16 %v1482, %v1450
    %v1771 = vpack.c.b16 %v1483, %v1451
    %v1772 = vpack.c.b16 %v1484, %v1452
    %v1773 = vpack.c.b16 %v1485, %v1453
    %v1774 = vpack.c.b16 %v1486, %v1454
    %v1775 = vpack.c.b16 %v1487, %v1455
    %v1776 = vpack.c.b16 %v1488, %v1456
    %v1777 = vpack.c.b16 %v1521, %v1489
    %v1778 = vpack.c.b16 %v1522, %v1490
    %v1779 = vpack.c.b16 %v1523, %v1491
    %v1780 = vpack.c.b16 %v1524, %v1492
    %v1781 = vpack.c.b16 %v1525, %v1493
    %v1782 = vpack.c.b16 %v1526, %v1494
    %v1783 = vpack.c.b16 %v1527, %v1495
    %v1784 = vpack.c.b16 %v1528, %v1496
    %v1785 = vpack.c.b16 %v1529, %v1497
    %v1786 = vpack.c.b16 %v1530, %v1498
    %v1787 = vpack.c.b16 %v1531, %v1499
    %v1788 = vpack.c.b16 %v1532, %v1500
    %v1789 = vpack.c.b16 %v1533, %v1501
    %v1790 = vpack.c.b16 %v1534, %v1502
    %v1791 = vpack.c.b16 %v1535, %v1503
    %v1792 = vpack.c.b16 %v1536, %v1504
    %v1793 = vpack.c.b16 %v1537, %v1505
    %v1794 = vpack.c.b16 %v1538, %v1506
    %v1795 = vpack.c.b16 %v1539, %v1507
    %v1796 = vpack.c.b16 %v1540, %v1508
    %v1797 = vpack.c.b16 %v1541, %v1509
    %v1798 = vpack.c.b16 %v1542, %v1510
    %v1799 = vpack.c.b16 %v1543, %v1511
    %v1800 = vpack.c.b16 %v1544, %v1512
    %v1801 = vpack.c.b16 %v1545, %v1513
    %v1802 = vpack.c.b16 %v1546, %v1514
    %v1803 = vpack.c.b16 %v1547, %v1515
    %v1804 = vpack.c.b16 %v1548, %v1516
    %v1805 = vpack.c.b16 %v1549, %v1517
    %v1806 = vpack.c.b16 %v1550, %v1518
    %v1807 = vpack.c.b16 %v1551, %v1519
    %v1808 = vpack.c.b16 %v1552, %v1520
    %2065 = vmatpush.bf16.msra.mxu0 %v1777
    %2066 = vmatpush.bf16.msra.mxu0 %v1745
    %2067 = vmatpush.bf16.msra.mxu0 %v1713
    %2068 = vmatpush.bf16.msra.mxu0 %v1681
    %2069 = vmatpush.bf16.msra.mxu0 %v1649
    %2070 = vmatpush.bf16.msra.mxu0 %v1617
    %2071 = vmatpush.bf16.msra.mxu0 %v1585
    %2072 = vmatpush.bf16.msra.mxu0 %v1553
    %2073 = vmatmul.bf16.gmra.mxu0 %v456
    %v2074 = vpop.f32.mrf.mxu0
    %v2075 = vadd.f32 %v721, %v2074
    %v2076 = vpop.f32.mrf.mxu0
    %2077 = vdwg.mxu0
    %2078 = vmatpush.bf16.msra.mxu0 %v1778
    %2079 = vmatpush.bf16.msra.mxu0 %v1746
    %2080 = vmatpush.bf16.msra.mxu0 %v1714
    %2081 = vmatpush.bf16.msra.mxu0 %v1682
    %2082 = vmatpush.bf16.msra.mxu0 %v1650
    %2083 = vmatpush.bf16.msra.mxu0 %v1618
    %2084 = vmatpush.bf16.msra.mxu0 %v1586
    %2085 = vmatpush.bf16.msra.mxu0 %v1554
    %2086 = vmatmul.bf16.gmra.mxu0 %v456
    %v2087 = vpop.f32.mrf.mxu0
    %v2088 = vadd.f32 %v722, %v2087
    %v2089 = vpop.f32.mrf.mxu0
    %2090 = vdwg.mxu0
    %2091 = vmatpush.bf16.msra.mxu0 %v1779
    %2092 = vmatpush.bf16.msra.mxu0 %v1747
    %2093 = vmatpush.bf16.msra.mxu0 %v1715
    %2094 = vmatpush.bf16.msra.mxu0 %v1683
    %2095 = vmatpush.bf16.msra.mxu0 %v1651
    %2096 = vmatpush.bf16.msra.mxu0 %v1619
    %2097 = vmatpush.bf16.msra.mxu0 %v1587
    %2098 = vmatpush.bf16.msra.mxu0 %v1555
    %2099 = vmatmul.bf16.gmra.mxu0 %v456
    %v2100 = vpop.f32.mrf.mxu0
    %v2101 = vadd.f32 %v723, %v2100
    %v2102 = vpop.f32.mrf.mxu0
    %2103 = vdwg.mxu0
    %2104 = vmatpush.bf16.msra.mxu0 %v1780
    %2105 = vmatpush.bf16.msra.mxu0 %v1748
    %2106 = vmatpush.bf16.msra.mxu0 %v1716
    %2107 = vmatpush.bf16.msra.mxu0 %v1684
    %2108 = vmatpush.bf16.msra.mxu0 %v1652
    %2109 = vmatpush.bf16.msra.mxu0 %v1620
    %2110 = vmatpush.bf16.msra.mxu0 %v1588
    %2111 = vmatpush.bf16.msra.mxu0 %v1556
    %2112 = vmatmul.bf16.gmra.mxu0 %v456
    %v2113 = vpop.f32.mrf.mxu0
    %v2114 = vadd.f32 %v724, %v2113
    %v2115 = vpop.f32.mrf.mxu0
    %2116 = vdwg.mxu0
    %2117 = vmatpush.bf16.msra.mxu0 %v1781
    %2118 = vmatpush.bf16.msra.mxu0 %v1749
    %2119 = vmatpush.bf16.msra.mxu0 %v1717
    %2120 = vmatpush.bf16.msra.mxu0 %v1685
    %2121 = vmatpush.bf16.msra.mxu0 %v1653
    %2122 = vmatpush.bf16.msra.mxu0 %v1621
    %2123 = vmatpush.bf16.msra.mxu0 %v1589
    %2124 = vmatpush.bf16.msra.mxu0 %v1557
    %2125 = vmatmul.bf16.gmra.mxu0 %v456
    %v2126 = vpop.f32.mrf.mxu0
    %v2127 = vadd.f32 %v725, %v2126
    %v2128 = vpop.f32.mrf.mxu0
    %2129 = vdwg.mxu0
    %2130 = vmatpush.bf16.msra.mxu0 %v1782
    %2131 = vmatpush.bf16.msra.mxu0 %v1750
    %2132 = vmatpush.bf16.msra.mxu0 %v1718
    %2133 = vmatpush.bf16.msra.mxu0 %v1686
    %2134 = vmatpush.bf16.msra.mxu0 %v1654
    %2135 = vmatpush.bf16.msra.mxu0 %v1622
    %2136 = vmatpush.bf16.msra.mxu0 %v1590
    %2137 = vmatpush.bf16.msra.mxu0 %v1558
    %2138 = vmatmul.bf16.gmra.mxu0 %v456
    %v2139 = vpop.f32.mrf.mxu0
    %v2140 = vadd.f32 %v726, %v2139
    %v2141 = vpop.f32.mrf.mxu0
    %2142 = vdwg.mxu0
    %2143 = vmatpush.bf16.msra.mxu0 %v1783
    %2144 = vmatpush.bf16.msra.mxu0 %v1751
    %2145 = vmatpush.bf16.msra.mxu0 %v1719
    %2146 = vmatpush.bf16.msra.mxu0 %v1687
    %2147 = vmatpush.bf16.msra.mxu0 %v1655
    %2148 = vmatpush.bf16.msra.mxu0 %v1623
    %2149 = vmatpush.bf16.msra.mxu0 %v1591
    %2150 = vmatpush.bf16.msra.mxu0 %v1559
    %2151 = vmatmul.bf16.gmra.mxu0 %v456
    %v2152 = vpop.f32.mrf.mxu0
    %v2153 = vadd.f32 %v727, %v2152
    %v2154 = vpop.f32.mrf.mxu0
    %2155 = vdwg.mxu0
    %2156 = vmatpush.bf16.msra.mxu0 %v1784
    %2157 = vmatpush.bf16.msra.mxu0 %v1752
    %2158 = vmatpush.bf16.msra.mxu0 %v1720
    %2159 = vmatpush.bf16.msra.mxu0 %v1688
    %2160 = vmatpush.bf16.msra.mxu0 %v1656
    %2161 = vmatpush.bf16.msra.mxu0 %v1624
    %2162 = vmatpush.bf16.msra.mxu0 %v1592
    %2163 = vmatpush.bf16.msra.mxu0 %v1560
    %2164 = vmatmul.bf16.gmra.mxu0 %v456
    %v2165 = vpop.f32.mrf.mxu0
    %v2166 = vadd.f32 %v728, %v2165
    %v2167 = vpop.f32.mrf.mxu0
    %2168 = vdwg.mxu0
    %2169 = vmatpush.bf16.msra.mxu0 %v1785
    %2170 = vmatpush.bf16.msra.mxu0 %v1753
    %2171 = vmatpush.bf16.msra.mxu0 %v1721
    %2172 = vmatpush.bf16.msra.mxu0 %v1689
    %2173 = vmatpush.bf16.msra.mxu0 %v1657
    %2174 = vmatpush.bf16.msra.mxu0 %v1625
    %2175 = vmatpush.bf16.msra.mxu0 %v1593
    %2176 = vmatpush.bf16.msra.mxu0 %v1561
    %2177 = vmatmul.bf16.gmra.mxu0 %v456
    %v2178 = vpop.f32.mrf.mxu0
    %v2179 = vadd.f32 %v729, %v2178
    %v2180 = vpop.f32.mrf.mxu0
    %2181 = vdwg.mxu0
    %2182 = vmatpush.bf16.msra.mxu0 %v1786
    %2183 = vmatpush.bf16.msra.mxu0 %v1754
    %2184 = vmatpush.bf16.msra.mxu0 %v1722
    %2185 = vmatpush.bf16.msra.mxu0 %v1690
    %2186 = vmatpush.bf16.msra.mxu0 %v1658
    %2187 = vmatpush.bf16.msra.mxu0 %v1626
    %2188 = vmatpush.bf16.msra.mxu0 %v1594
    %2189 = vmatpush.bf16.msra.mxu0 %v1562
    %2190 = vmatmul.bf16.gmra.mxu0 %v456
    %v2191 = vpop.f32.mrf.mxu0
    %v2192 = vadd.f32 %v730, %v2191
    %v2193 = vpop.f32.mrf.mxu0
    %2194 = vdwg.mxu0
    %2195 = vmatpush.bf16.msra.mxu0 %v1787
    %2196 = vmatpush.bf16.msra.mxu0 %v1755
    %2197 = vmatpush.bf16.msra.mxu0 %v1723
    %2198 = vmatpush.bf16.msra.mxu0 %v1691
    %2199 = vmatpush.bf16.msra.mxu0 %v1659
    %2200 = vmatpush.bf16.msra.mxu0 %v1627
    %2201 = vmatpush.bf16.msra.mxu0 %v1595
    %2202 = vmatpush.bf16.msra.mxu0 %v1563
    %2203 = vmatmul.bf16.gmra.mxu0 %v456
    %v2204 = vpop.f32.mrf.mxu0
    %v2205 = vadd.f32 %v731, %v2204
    %v2206 = vpop.f32.mrf.mxu0
    %2207 = vdwg.mxu0
    %2208 = vmatpush.bf16.msra.mxu0 %v1788
    %2209 = vmatpush.bf16.msra.mxu0 %v1756
    %2210 = vmatpush.bf16.msra.mxu0 %v1724
    %2211 = vmatpush.bf16.msra.mxu0 %v1692
    %2212 = vmatpush.bf16.msra.mxu0 %v1660
    %2213 = vmatpush.bf16.msra.mxu0 %v1628
    %2214 = vmatpush.bf16.msra.mxu0 %v1596
    %2215 = vmatpush.bf16.msra.mxu0 %v1564
    %2216 = vmatmul.bf16.gmra.mxu0 %v456
    %v2217 = vpop.f32.mrf.mxu0
    %v2218 = vadd.f32 %v732, %v2217
    %v2219 = vpop.f32.mrf.mxu0
    %2220 = vdwg.mxu0
    %2221 = vmatpush.bf16.msra.mxu0 %v1789
    %2222 = vmatpush.bf16.msra.mxu0 %v1757
    %2223 = vmatpush.bf16.msra.mxu0 %v1725
    %2224 = vmatpush.bf16.msra.mxu0 %v1693
    %2225 = vmatpush.bf16.msra.mxu0 %v1661
    %2226 = vmatpush.bf16.msra.mxu0 %v1629
    %2227 = vmatpush.bf16.msra.mxu0 %v1597
    %2228 = vmatpush.bf16.msra.mxu0 %v1565
    %2229 = vmatmul.bf16.gmra.mxu0 %v456
    %v2230 = vpop.f32.mrf.mxu0
    %v2231 = vadd.f32 %v733, %v2230
    %v2232 = vpop.f32.mrf.mxu0
    %2233 = vdwg.mxu0
    %2234 = vmatpush.bf16.msra.mxu0 %v1790
    %2235 = vmatpush.bf16.msra.mxu0 %v1758
    %2236 = vmatpush.bf16.msra.mxu0 %v1726
    %2237 = vmatpush.bf16.msra.mxu0 %v1694
    %2238 = vmatpush.bf16.msra.mxu0 %v1662
    %2239 = vmatpush.bf16.msra.mxu0 %v1630
    %2240 = vmatpush.bf16.msra.mxu0 %v1598
    %2241 = vmatpush.bf16.msra.mxu0 %v1566
    %2242 = vmatmul.bf16.gmra.mxu0 %v456
    %v2243 = vpop.f32.mrf.mxu0
    %v2244 = vadd.f32 %v734, %v2243
    %v2245 = vpop.f32.mrf.mxu0
    %2246 = vdwg.mxu0
    %2247 = vmatpush.bf16.msra.mxu0 %v1791
    %2248 = vmatpush.bf16.msra.mxu0 %v1759
    %2249 = vmatpush.bf16.msra.mxu0 %v1727
    %2250 = vmatpush.bf16.msra.mxu0 %v1695
    %2251 = vmatpush.bf16.msra.mxu0 %v1663
    %2252 = vmatpush.bf16.msra.mxu0 %v1631
    %2253 = vmatpush.bf16.msra.mxu0 %v1599
    %2254 = vmatpush.bf16.msra.mxu0 %v1567
    %2255 = vmatmul.bf16.gmra.mxu0 %v456
    %v2256 = vpop.f32.mrf.mxu0
    %v2257 = vadd.f32 %v735, %v2256
    %v2258 = vpop.f32.mrf.mxu0
    %2259 = vdwg.mxu0
    %2260 = vmatpush.bf16.msra.mxu0 %v1792
    %2261 = vmatpush.bf16.msra.mxu0 %v1760
    %2262 = vmatpush.bf16.msra.mxu0 %v1728
    %2263 = vmatpush.bf16.msra.mxu0 %v1696
    %2264 = vmatpush.bf16.msra.mxu0 %v1664
    %2265 = vmatpush.bf16.msra.mxu0 %v1632
    %2266 = vmatpush.bf16.msra.mxu0 %v1600
    %2267 = vmatpush.bf16.msra.mxu0 %v1568
    %2268 = vmatmul.bf16.gmra.mxu0 %v456
    %v2269 = vpop.f32.mrf.mxu0
    %v2270 = vadd.f32 %v736, %v2269
    %v2271 = vpop.f32.mrf.mxu0
    %2272 = vdwg.mxu0
    %2273 = vmatpush.bf16.msra.mxu0 %v1793
    %2274 = vmatpush.bf16.msra.mxu0 %v1761
    %2275 = vmatpush.bf16.msra.mxu0 %v1729
    %2276 = vmatpush.bf16.msra.mxu0 %v1697
    %2277 = vmatpush.bf16.msra.mxu0 %v1665
    %2278 = vmatpush.bf16.msra.mxu0 %v1633
    %2279 = vmatpush.bf16.msra.mxu0 %v1601
    %2280 = vmatpush.bf16.msra.mxu0 %v1569
    %2281 = vmatmul.bf16.gmra.mxu0 %v456
    %v2282 = vpop.f32.mrf.mxu0
    %v2283 = vadd.f32 %v737, %v2282
    %v2284 = vpop.f32.mrf.mxu0
    %2285 = vdwg.mxu0
    %2286 = vmatpush.bf16.msra.mxu0 %v1794
    %2287 = vmatpush.bf16.msra.mxu0 %v1762
    %2288 = vmatpush.bf16.msra.mxu0 %v1730
    %2289 = vmatpush.bf16.msra.mxu0 %v1698
    %2290 = vmatpush.bf16.msra.mxu0 %v1666
    %2291 = vmatpush.bf16.msra.mxu0 %v1634
    %2292 = vmatpush.bf16.msra.mxu0 %v1602
    %2293 = vmatpush.bf16.msra.mxu0 %v1570
    %2294 = vmatmul.bf16.gmra.mxu0 %v456
    %v2295 = vpop.f32.mrf.mxu0
    %v2296 = vadd.f32 %v738, %v2295
    %v2297 = vpop.f32.mrf.mxu0
    %2298 = vdwg.mxu0
    %2299 = vmatpush.bf16.msra.mxu0 %v1795
    %2300 = vmatpush.bf16.msra.mxu0 %v1763
    %2301 = vmatpush.bf16.msra.mxu0 %v1731
    %2302 = vmatpush.bf16.msra.mxu0 %v1699
    %2303 = vmatpush.bf16.msra.mxu0 %v1667
    %2304 = vmatpush.bf16.msra.mxu0 %v1635
    %2305 = vmatpush.bf16.msra.mxu0 %v1603
    %2306 = vmatpush.bf16.msra.mxu0 %v1571
    %2307 = vmatmul.bf16.gmra.mxu0 %v456
    %v2308 = vpop.f32.mrf.mxu0
    %v2309 = vadd.f32 %v739, %v2308
    %v2310 = vpop.f32.mrf.mxu0
    %2311 = vdwg.mxu0
    %2312 = vmatpush.bf16.msra.mxu0 %v1796
    %2313 = vmatpush.bf16.msra.mxu0 %v1764
    %2314 = vmatpush.bf16.msra.mxu0 %v1732
    %2315 = vmatpush.bf16.msra.mxu0 %v1700
    %2316 = vmatpush.bf16.msra.mxu0 %v1668
    %2317 = vmatpush.bf16.msra.mxu0 %v1636
    %2318 = vmatpush.bf16.msra.mxu0 %v1604
    %2319 = vmatpush.bf16.msra.mxu0 %v1572
    %2320 = vmatmul.bf16.gmra.mxu0 %v456
    %v2321 = vpop.f32.mrf.mxu0
    %v2322 = vadd.f32 %v740, %v2321
    %v2323 = vpop.f32.mrf.mxu0
    %2324 = vdwg.mxu0
    %2325 = vmatpush.bf16.msra.mxu0 %v1797
    %2326 = vmatpush.bf16.msra.mxu0 %v1765
    %2327 = vmatpush.bf16.msra.mxu0 %v1733
    %2328 = vmatpush.bf16.msra.mxu0 %v1701
    %2329 = vmatpush.bf16.msra.mxu0 %v1669
    %2330 = vmatpush.bf16.msra.mxu0 %v1637
    %2331 = vmatpush.bf16.msra.mxu0 %v1605
    %2332 = vmatpush.bf16.msra.mxu0 %v1573
    %2333 = vmatmul.bf16.gmra.mxu0 %v456
    %v2334 = vpop.f32.mrf.mxu0
    %v2335 = vadd.f32 %v741, %v2334
    %v2336 = vpop.f32.mrf.mxu0
    %2337 = vdwg.mxu0
    %2338 = vmatpush.bf16.msra.mxu0 %v1798
    %2339 = vmatpush.bf16.msra.mxu0 %v1766
    %2340 = vmatpush.bf16.msra.mxu0 %v1734
    %2341 = vmatpush.bf16.msra.mxu0 %v1702
    %2342 = vmatpush.bf16.msra.mxu0 %v1670
    %2343 = vmatpush.bf16.msra.mxu0 %v1638
    %2344 = vmatpush.bf16.msra.mxu0 %v1606
    %2345 = vmatpush.bf16.msra.mxu0 %v1574
    %2346 = vmatmul.bf16.gmra.mxu0 %v456
    %v2347 = vpop.f32.mrf.mxu0
    %v2348 = vadd.f32 %v742, %v2347
    %v2349 = vpop.f32.mrf.mxu0
    %2350 = vdwg.mxu0
    %2351 = vmatpush.bf16.msra.mxu0 %v1799
    %2352 = vmatpush.bf16.msra.mxu0 %v1767
    %2353 = vmatpush.bf16.msra.mxu0 %v1735
    %2354 = vmatpush.bf16.msra.mxu0 %v1703
    %2355 = vmatpush.bf16.msra.mxu0 %v1671
    %2356 = vmatpush.bf16.msra.mxu0 %v1639
    %2357 = vmatpush.bf16.msra.mxu0 %v1607
    %2358 = vmatpush.bf16.msra.mxu0 %v1575
    %2359 = vmatmul.bf16.gmra.mxu0 %v456
    %v2360 = vpop.f32.mrf.mxu0
    %v2361 = vadd.f32 %v743, %v2360
    %v2362 = vpop.f32.mrf.mxu0
    %2363 = vdwg.mxu0
    %2364 = vmatpush.bf16.msra.mxu0 %v1800
    %2365 = vmatpush.bf16.msra.mxu0 %v1768
    %2366 = vmatpush.bf16.msra.mxu0 %v1736
    %2367 = vmatpush.bf16.msra.mxu0 %v1704
    %2368 = vmatpush.bf16.msra.mxu0 %v1672
    %2369 = vmatpush.bf16.msra.mxu0 %v1640
    %2370 = vmatpush.bf16.msra.mxu0 %v1608
    %2371 = vmatpush.bf16.msra.mxu0 %v1576
    %2372 = vmatmul.bf16.gmra.mxu0 %v456
    %v2373 = vpop.f32.mrf.mxu0
    %v2374 = vadd.f32 %v744, %v2373
    %v2375 = vpop.f32.mrf.mxu0
    %2376 = vdwg.mxu0
    %2377 = vmatpush.bf16.msra.mxu0 %v1801
    %2378 = vmatpush.bf16.msra.mxu0 %v1769
    %2379 = vmatpush.bf16.msra.mxu0 %v1737
    %2380 = vmatpush.bf16.msra.mxu0 %v1705
    %2381 = vmatpush.bf16.msra.mxu0 %v1673
    %2382 = vmatpush.bf16.msra.mxu0 %v1641
    %2383 = vmatpush.bf16.msra.mxu0 %v1609
    %2384 = vmatpush.bf16.msra.mxu0 %v1577
    %2385 = vmatmul.bf16.gmra.mxu0 %v456
    %v2386 = vpop.f32.mrf.mxu0
    %v2387 = vadd.f32 %v745, %v2386
    %v2388 = vpop.f32.mrf.mxu0
    %2389 = vdwg.mxu0
    %2390 = vmatpush.bf16.msra.mxu0 %v1802
    %2391 = vmatpush.bf16.msra.mxu0 %v1770
    %2392 = vmatpush.bf16.msra.mxu0 %v1738
    %2393 = vmatpush.bf16.msra.mxu0 %v1706
    %2394 = vmatpush.bf16.msra.mxu0 %v1674
    %2395 = vmatpush.bf16.msra.mxu0 %v1642
    %2396 = vmatpush.bf16.msra.mxu0 %v1610
    %2397 = vmatpush.bf16.msra.mxu0 %v1578
    %2398 = vmatmul.bf16.gmra.mxu0 %v456
    %v2399 = vpop.f32.mrf.mxu0
    %v2400 = vadd.f32 %v746, %v2399
    %v2401 = vpop.f32.mrf.mxu0
    %2402 = vdwg.mxu0
    %2403 = vmatpush.bf16.msra.mxu0 %v1803
    %2404 = vmatpush.bf16.msra.mxu0 %v1771
    %2405 = vmatpush.bf16.msra.mxu0 %v1739
    %2406 = vmatpush.bf16.msra.mxu0 %v1707
    %2407 = vmatpush.bf16.msra.mxu0 %v1675
    %2408 = vmatpush.bf16.msra.mxu0 %v1643
    %2409 = vmatpush.bf16.msra.mxu0 %v1611
    %2410 = vmatpush.bf16.msra.mxu0 %v1579
    %2411 = vmatmul.bf16.gmra.mxu0 %v456
    %v2412 = vpop.f32.mrf.mxu0
    %v2413 = vadd.f32 %v747, %v2412
    %v2414 = vpop.f32.mrf.mxu0
    %2415 = vdwg.mxu0
    %2416 = vmatpush.bf16.msra.mxu0 %v1804
    %2417 = vmatpush.bf16.msra.mxu0 %v1772
    %2418 = vmatpush.bf16.msra.mxu0 %v1740
    %2419 = vmatpush.bf16.msra.mxu0 %v1708
    %2420 = vmatpush.bf16.msra.mxu0 %v1676
    %2421 = vmatpush.bf16.msra.mxu0 %v1644
    %2422 = vmatpush.bf16.msra.mxu0 %v1612
    %2423 = vmatpush.bf16.msra.mxu0 %v1580
    %2424 = vmatmul.bf16.gmra.mxu0 %v456
    %v2425 = vpop.f32.mrf.mxu0
    %v2426 = vadd.f32 %v748, %v2425
    %v2427 = vpop.f32.mrf.mxu0
    %2428 = vdwg.mxu0
    %2429 = vmatpush.bf16.msra.mxu0 %v1805
    %2430 = vmatpush.bf16.msra.mxu0 %v1773
    %2431 = vmatpush.bf16.msra.mxu0 %v1741
    %2432 = vmatpush.bf16.msra.mxu0 %v1709
    %2433 = vmatpush.bf16.msra.mxu0 %v1677
    %2434 = vmatpush.bf16.msra.mxu0 %v1645
    %2435 = vmatpush.bf16.msra.mxu0 %v1613
    %2436 = vmatpush.bf16.msra.mxu0 %v1581
    %2437 = vmatmul.bf16.gmra.mxu0 %v456
    %v2438 = vpop.f32.mrf.mxu0
    %v2439 = vadd.f32 %v749, %v2438
    %v2440 = vpop.f32.mrf.mxu0
    %2441 = vdwg.mxu0
    %2442 = vmatpush.bf16.msra.mxu0 %v1806
    %2443 = vmatpush.bf16.msra.mxu0 %v1774
    %2444 = vmatpush.bf16.msra.mxu0 %v1742
    %2445 = vmatpush.bf16.msra.mxu0 %v1710
    %2446 = vmatpush.bf16.msra.mxu0 %v1678
    %2447 = vmatpush.bf16.msra.mxu0 %v1646
    %2448 = vmatpush.bf16.msra.mxu0 %v1614
    %2449 = vmatpush.bf16.msra.mxu0 %v1582
    %2450 = vmatmul.bf16.gmra.mxu0 %v456
    %v2451 = vpop.f32.mrf.mxu0
    %v2452 = vadd.f32 %v750, %v2451
    %v2453 = vpop.f32.mrf.mxu0
    %2454 = vdwg.mxu0
    %2455 = vmatpush.bf16.msra.mxu0 %v1807
    %2456 = vmatpush.bf16.msra.mxu0 %v1775
    %2457 = vmatpush.bf16.msra.mxu0 %v1743
    %2458 = vmatpush.bf16.msra.mxu0 %v1711
    %2459 = vmatpush.bf16.msra.mxu0 %v1679
    %2460 = vmatpush.bf16.msra.mxu0 %v1647
    %2461 = vmatpush.bf16.msra.mxu0 %v1615
    %2462 = vmatpush.bf16.msra.mxu0 %v1583
    %2463 = vmatmul.bf16.gmra.mxu0 %v456
    %v2464 = vpop.f32.mrf.mxu0
    %v2465 = vadd.f32 %v751, %v2464
    %v2466 = vpop.f32.mrf.mxu0
    %2467 = vdwg.mxu0
    %2468 = vmatpush.bf16.msra.mxu0 %v1808
    %2469 = vmatpush.bf16.msra.mxu0 %v1776
    %2470 = vmatpush.bf16.msra.mxu0 %v1744
    %2471 = vmatpush.bf16.msra.mxu0 %v1712
    %2472 = vmatpush.bf16.msra.mxu0 %v1680
    %2473 = vmatpush.bf16.msra.mxu0 %v1648
    %2474 = vmatpush.bf16.msra.mxu0 %v1616
    %2475 = vmatpush.bf16.msra.mxu0 %v1584
    %2476 = vmatmul.bf16.gmra.mxu0 %v456
    %v2477 = vpop.f32.mrf.mxu0
    %v2478 = vadd.f32 %v752, %v2477
    %v2479 = vpop.f32.mrf.mxu0
    %2480 = vdwg.mxu0
    %v2481 = vmul.f32 %v2075, 0.5
    %v2482 = vmul.f32 %v2088, 0.5
    %v2483 = vmul.f32 %v2101, 0.5
    %v2484 = vmul.f32 %v2114, 0.5
    %v2485 = vmul.f32 %v2127, 0.5
    %v2486 = vmul.f32 %v2140, 0.5
    %v2487 = vmul.f32 %v2153, 0.5
    %v2488 = vmul.f32 %v2166, 0.5
    %v2489 = vmul.f32 %v2179, 0.5
    %v2490 = vmul.f32 %v2192, 0.5
    %v2491 = vmul.f32 %v2205, 0.5
    %v2492 = vmul.f32 %v2218, 0.5
    %v2493 = vmul.f32 %v2231, 0.5
    %v2494 = vmul.f32 %v2244, 0.5
    %v2495 = vmul.f32 %v2257, 0.5
    %v2496 = vmul.f32 %v2270, 0.5
    %v2497 = vmul.f32 %v2283, 0.5
    %v2498 = vmul.f32 %v2296, 0.5
    %v2499 = vmul.f32 %v2309, 0.5
    %v2500 = vmul.f32 %v2322, 0.5
    %v2501 = vmul.f32 %v2335, 0.5
    %v2502 = vmul.f32 %v2348, 0.5
    %v2503 = vmul.f32 %v2361, 0.5
    %v2504 = vmul.f32 %v2374, 0.5
    %v2505 = vmul.f32 %v2387, 0.5
    %v2506 = vmul.f32 %v2400, 0.5
    %v2507 = vmul.f32 %v2413, 0.5
    %v2508 = vmul.f32 %v2426, 0.5
    %v2509 = vmul.f32 %v2439, 0.5
    %v2510 = vmul.f32 %v2452, 0.5
    %v2511 = vmul.f32 %v2465, 0.5
    %v2512 = vmul.f32 %v2478, 0.5
    %v2513 = vtanh.pop %v2481
    %v2514 = vtanh.pop %v2482
    %v2515 = vtanh.pop %v2483
    %v2516 = vtanh.pop %v2484
    %v2517 = vtanh.pop %v2485
    %v2518 = vtanh.pop %v2486
    %v2519 = vtanh.pop %v2487
    %v2520 = vtanh.pop %v2488
    %v2521 = vtanh.pop %v2489
    %v2522 = vtanh.pop %v2490
    %v2523 = vtanh.pop %v2491
    %v2524 = vtanh.pop %v2492
    %v2525 = vtanh.pop %v2493
    %v2526 = vtanh.pop %v2494
    %v2527 = vtanh.pop %v2495
    %v2528 = vtanh.pop %v2496
    %v2529 = vtanh.pop %v2497
    %v2530 = vtanh.pop %v2498
    %v2531 = vtanh.pop %v2499
    %v2532 = vtanh.pop %v2500
    %v2533 = vtanh.pop %v2501
    %v2534 = vtanh.pop %v2502
    %v2535 = vtanh.pop %v2503
    %v2536 = vtanh.pop %v2504
    %v2537 = vtanh.pop %v2505
    %v2538 = vtanh.pop %v2506
    %v2539 = vtanh.pop %v2507
    %v2540 = vtanh.pop %v2508
    %v2541 = vtanh.pop %v2509
    %v2542 = vtanh.pop %v2510
    %v2543 = vtanh.pop %v2511
    %v2544 = vtanh.pop %v2512
    %v2545 = vadd.f32 %v2513, 1.0
    %v2546 = vadd.f32 %v2514, 1.0
    %v2547 = vadd.f32 %v2515, 1.0
    %v2548 = vadd.f32 %v2516, 1.0
    %v2549 = vadd.f32 %v2517, 1.0
    %v2550 = vadd.f32 %v2518, 1.0
    %v2551 = vadd.f32 %v2519, 1.0
    %v2552 = vadd.f32 %v2520, 1.0
    %v2553 = vadd.f32 %v2521, 1.0
    %v2554 = vadd.f32 %v2522, 1.0
    %v2555 = vadd.f32 %v2523, 1.0
    %v2556 = vadd.f32 %v2524, 1.0
    %v2557 = vadd.f32 %v2525, 1.0
    %v2558 = vadd.f32 %v2526, 1.0
    %v2559 = vadd.f32 %v2527, 1.0
    %v2560 = vadd.f32 %v2528, 1.0
    %v2561 = vadd.f32 %v2529, 1.0
    %v2562 = vadd.f32 %v2530, 1.0
    %v2563 = vadd.f32 %v2531, 1.0
    %v2564 = vadd.f32 %v2532, 1.0
    %v2565 = vadd.f32 %v2533, 1.0
    %v2566 = vadd.f32 %v2534, 1.0
    %v2567 = vadd.f32 %v2535, 1.0
    %v2568 = vadd.f32 %v2536, 1.0
    %v2569 = vadd.f32 %v2537, 1.0
    %v2570 = vadd.f32 %v2538, 1.0
    %v2571 = vadd.f32 %v2539, 1.0
    %v2572 = vadd.f32 %v2540, 1.0
    %v2573 = vadd.f32 %v2541, 1.0
    %v2574 = vadd.f32 %v2542, 1.0
    %v2575 = vadd.f32 %v2543, 1.0
    %v2576 = vadd.f32 %v2544, 1.0
    %v2577 = vmul.f32 %v2545, 0.5
    %v2578 = vmul.f32 %v2546, 0.5
    %v2579 = vmul.f32 %v2547, 0.5
    %v2580 = vmul.f32 %v2548, 0.5
    %v2581 = vmul.f32 %v2549, 0.5
    %v2582 = vmul.f32 %v2550, 0.5
    %v2583 = vmul.f32 %v2551, 0.5
    %v2584 = vmul.f32 %v2552, 0.5
    %v2585 = vmul.f32 %v2553, 0.5
    %v2586 = vmul.f32 %v2554, 0.5
    %v2587 = vmul.f32 %v2555, 0.5
    %v2588 = vmul.f32 %v2556, 0.5
    %v2589 = vmul.f32 %v2557, 0.5
    %v2590 = vmul.f32 %v2558, 0.5
    %v2591 = vmul.f32 %v2559, 0.5
    %v2592 = vmul.f32 %v2560, 0.5
    %v2593 = vmul.f32 %v2561, 0.5
    %v2594 = vmul.f32 %v2562, 0.5
    %v2595 = vmul.f32 %v2563, 0.5
    %v2596 = vmul.f32 %v2564, 0.5
    %v2597 = vmul.f32 %v2565, 0.5
    %v2598 = vmul.f32 %v2566, 0.5
    %v2599 = vmul.f32 %v2567, 0.5
    %v2600 = vmul.f32 %v2568, 0.5
    %v2601 = vmul.f32 %v2569, 0.5
    %v2602 = vmul.f32 %v2570, 0.5
    %v2603 = vmul.f32 %v2571, 0.5
    %v2604 = vmul.f32 %v2572, 0.5
    %v2605 = vmul.f32 %v2573, 0.5
    %v2606 = vmul.f32 %v2574, 0.5
    %v2607 = vmul.f32 %v2575, 0.5
    %v2608 = vmul.f32 %v2576, 0.5
    %v2609 = vpack.c.bf16 %v2578, %v2577
    %v2610 = vpack.c.bf16 %v2580, %v2579
    %v2611 = vpack.c.bf16 %v2582, %v2581
    %v2612 = vpack.c.bf16 %v2584, %v2583
    %v2613 = vpack.c.bf16 %v2586, %v2585
    %v2614 = vpack.c.bf16 %v2588, %v2587
    %v2615 = vpack.c.bf16 %v2590, %v2589
    %v2616 = vpack.c.bf16 %v2592, %v2591
    %v2617 = vpack.c.bf16 %v2594, %v2593
    %v2618 = vpack.c.bf16 %v2596, %v2595
    %v2619 = vpack.c.bf16 %v2598, %v2597
    %v2620 = vpack.c.bf16 %v2600, %v2599
    %v2621 = vpack.c.bf16 %v2602, %v2601
    %v2622 = vpack.c.bf16 %v2604, %v2603
    %v2623 = vpack.c.bf16 %v2606, %v2605
    %v2624 = vpack.c.bf16 %v2608, %v2607
    %2625 = vst [vmem:[%s9] sm:$0xff] %v2609
    %2626 = vst [vmem:[%s9 + $0x8] sm:$0xff] %v2610
    %2627 = vst [vmem:[%s9 + $0x10] sm:$0xff] %v2611
    %2628 = vst [vmem:[%s9 + $0x18] sm:$0xff] %v2612
    %2629 = vst [vmem:[%s9 + $0x20] sm:$0xff] %v2613
    %2630 = vst [vmem:[%s9 + $0x28] sm:$0xff] %v2614
    %2631 = vst [vmem:[%s9 + $0x30] sm:$0xff] %v2615
    %2632 = vst [vmem:[%s9 + $0x38] sm:$0xff] %v2616
    %2633 = vst [vmem:[%s9 + $0x40] sm:$0xff] %v2617
    %2634 = vst [vmem:[%s9 + $0x48] sm:$0xff] %v2618
    %2635 = vst [vmem:[%s9 + $0x50] sm:$0xff] %v2619
    %2636 = vst [vmem:[%s9 + $0x58] sm:$0xff] %v2620
    %2637 = vst [vmem:[%s9 + $0x60] sm:$0xff] %v2621
    %2638 = vst [vmem:[%s9 + $0x68] sm:$0xff] %v2622
    %2639 = vst [vmem:[%s9 + $0x70] sm:$0xff] %v2623
    %2640 = vst [vmem:[%s9 + $0x78] sm:$0xff] %v2624
    // Predicated region
    $region58: #{map_generator_forward.1} parent=1 // pred_check
      _
    $region59: #{map_generator_forward.1} parent=1 // pred_check_branch
      %2642 = sbr.rel (0) target = $region61
    $region60: #{map_generator_forward.1} parent=1 // pred_region
      _
    $region61: #{map_generator_forward.1} parent=1 // pred_fallthru
      _
    // Predicated region
    $region62: #{map_generator_forward.1} parent=1 // pred_check
      _
    $region63: #{map_generator_forward.1} parent=1 // pred_check_branch
      %2644 = sbr.rel (0) target = $region65
    $region64: #{map_generator_forward.1} parent=1 // pred_region
      _
    $region65: #{map_generator_forward.1} parent=1 // pred_fallthru
      _
    %2645 = vsyncpa [#allocation3], 1
    %2646 = vsyncpa [#allocation5], 1
    %2647 = vsyncpa [#allocation8], 1

</llo_original>
